<compile_context>
chip_gen: v5e
topology: v5e:2x2
jax: 0.10.0
libtpu: 0.0.40
codegen_flags: <defaults>
</compile_context>

<pallas_src>
import jax
import jax.numpy as jnp
from jax.experimental import pallas as pl
from jax.experimental.pallas import tpu as pltpu

K_PAD = 1024     # 1000 features zero-padded to a lane-aligned contraction dim
N_OUT_PAD = 128  # 2 logits zero-padded to one full lane group


def head_kernel(x_ref, w1_ref, b1_ref, w2_ref, b2_ref, w3_ref, b3_ref, o_ref):
    """Fused head: (Linear+BN+ReLU) x2 -> Linear, BN/bias pre-folded into w/b.

    x_ref : (TB, 1024) bf16
    w1_ref: (1024, 512) bf16, b1_ref: (1, 512) f32
    w2_ref: (512, 256)  bf16, b2_ref: (1, 256) f32
    w3_ref: (256, 128)  bf16, b3_ref: (1, 128) f32   (cols >= 2 are zero padding)
    o_ref : (TB, 128) f32
    """
    # Block 1: Linear(1000->512) [+ folded BN] + ReLU
    h1 = jnp.dot(x_ref[...], w1_ref[...], preferred_element_type=jnp.float32)
    h1 = jnp.maximum(h1 + b1_ref[...], 0.0).astype(jnp.bfloat16)

    # Block 2: Linear(512->256) [+ folded BN] + ReLU
    h2 = jnp.dot(h1, w2_ref[...], preferred_element_type=jnp.float32)
    h2 = jnp.maximum(h2 + b2_ref[...], 0.0).astype(jnp.bfloat16)

    # Final classifier: Linear(256->2), padded to 128 output lanes
    out = jnp.dot(h2, w3_ref[...], preferred_element_type=jnp.float32) + b3_ref[...]
    o_ref[...] = out


def make_params(key):
    """Parameters matching the PyTorch module's __init__, BN folded, padded, bf16.

    - Linear blocks 1 & 2: weight ~ N(0, 0.01), bias = 0 (Linear._initialize_weights);
      BatchNorm1d eval-mode with fresh stats (gamma=1, beta=0, mean=0, var=1, eps=1e-5)
      folds to scale = 1/sqrt(1+eps), shift = 0.
    - Final nn.Linear(256, 2): PyTorch default init U(-1/sqrt(256), 1/sqrt(256)).
    """
    k1, k2, k3, k4 = jax.random.split(key, 4)
    eps = 1e-5
    bn_scale = 1.0 / jnp.sqrt(1.0 + eps)

    # Weights stored as (in, out) == PyTorch weight (out, in) transposed.
    w1 = 0.01 * jax.random.normal(k1, (1000, 512), dtype=jnp.float32)
    w1 = w1 * bn_scale                                   # fold BN scale
    w1 = jnp.pad(w1, ((0, K_PAD - 1000), (0, 0)))        # pad K: 1000 -> 1024
    b1 = jnp.zeros((1, 512), dtype=jnp.float32)          # (0 - mean)*scale + beta = 0

    w2 = 0.01 * jax.random.normal(k2, (512, 256), dtype=jnp.float32)
    w2 = w2 * bn_scale
    b2 = jnp.zeros((1, 256), dtype=jnp.float32)

    bound = 1.0 / jnp.sqrt(256.0)
    w3 = jax.random.uniform(k3, (256, 2), minval=-bound, maxval=bound, dtype=jnp.float32)
    b3_small = jax.random.uniform(k4, (1, 2), minval=-bound, maxval=bound, dtype=jnp.float32)
    w3 = jnp.pad(w3, ((0, 0), (0, N_OUT_PAD - 2)))       # pad N: 2 -> 128 (lane-dense)
    b3 = jnp.pad(b3_small, ((0, 0), (0, N_OUT_PAD - 2)))

    return (w1.astype(jnp.bfloat16), b1,
            w2.astype(jnp.bfloat16), b2,
            w3.astype(jnp.bfloat16), b3)


@jax.jit
def model_head(x, params):
    """x: (B, 1000) f32 backbone features -> (B, 2) f32 logits."""
    w1, b1, w2, b2, w3, b3 = params
    B, F = x.shape

    # Pad features to the aligned contraction dim and cast activations to bf16.
    x = jnp.pad(x, ((0, 0), (0, K_PAD - F))).astype(jnp.bfloat16)

    # Batch tile: 128 rows (full MXU height) when B is large; one aligned tile otherwise.
    TB = 128 if B >= 128 else max(8, ((B + 7) // 8) * 8)
    B_pad = ((B + TB - 1) // TB) * TB
    if B_pad != B:
        x = jnp.pad(x, ((0, B_pad - B), (0, 0)))

    out = pl.pallas_call(
        head_kernel,
        out_shape=jax.ShapeDtypeStruct((B_pad, N_OUT_PAD), jnp.float32),
        grid_spec=pltpu.PrefetchScalarGridSpec(
            num_scalar_prefetch=0,
            grid=(B_pad // TB,),
            in_specs=[
                pl.BlockSpec((TB, K_PAD), lambda i: (i, 0)),     # x: tiled over batch
                pl.BlockSpec(w1.shape, lambda i: (0, 0)),        # weights: VMEM-resident
                pl.BlockSpec(b1.shape, lambda i: (0, 0)),
                pl.BlockSpec(w2.shape, lambda i: (0, 0)),
                pl.BlockSpec(b2.shape, lambda i: (0, 0)),
                pl.BlockSpec(w3.shape, lambda i: (0, 0)),
                pl.BlockSpec(b3.shape, lambda i: (0, 0)),
            ],
            out_specs=pl.BlockSpec((TB, N_OUT_PAD), lambda i: (i, 0)),
        ),
        compiler_params=pltpu.CompilerParams(
            dimension_semantics=("parallel",)),
    )(x, w1, b1, w2, b2, w3, b3)

    return out[:B, :2]


def reference_head(x, params):
    """Pure-JAX reference mirroring the kernel's bf16-in / f32-accumulate math."""
    w1, b1, w2, b2, w3, b3 = params
    xp = jnp.pad(x, ((0, 0), (0, K_PAD - x.shape[1]))).astype(jnp.bfloat16)
    h1 = jnp.dot(xp, w1, preferred_element_type=jnp.float32) + b1
    h1 = jnp.maximum(h1, 0.0).astype(jnp.bfloat16)
    h2 = jnp.dot(h1, w2, preferred_element_type=jnp.float32) + b2
    h2 = jnp.maximum(h2, 0.0).astype(jnp.bfloat16)
    out = jnp.dot(h2, w3, preferred_element_type=jnp.float32) + b3
    return out[:, :2]


if __name__ == "__main__":
    key = jax.random.PRNGKey(0)
    kx, kp = jax.random.split(key)

    B = 2
    # Backbone features (stand-in for resnext101_32x8d(x) output of shape (B, 1000)).
    x = jax.random.normal(kx, (B, 1000), dtype=jnp.float32)
    params = make_params(kp)

    out = model_head(x, params)
    out = jax.block_until_ready(out)

    ref = reference_head(x, params)
    assert out.shape == (B, 2), out.shape
    assert jnp.allclose(out, ref, atol=1e-3, rtol=1e-3), (out, ref)

    print("KERNEL_OK")
</pallas_src>

<mosaic_0001>
module attributes {stable_mosaic.version = 11 : i64} {
  func.func @head_kernel(%arg0: i32, %arg1: memref<8x1024xbf16, #tpu.memory_space<vmem>>, %arg2: memref<1024x512xbf16, #tpu.memory_space<vmem>>, %arg3: memref<1x512xf32, #tpu.memory_space<vmem>>, %arg4: memref<512x256xbf16, #tpu.memory_space<vmem>>, %arg5: memref<1x256xf32, #tpu.memory_space<vmem>>, %arg6: memref<256x128xbf16, #tpu.memory_space<vmem>>, %arg7: memref<1x128xf32, #tpu.memory_space<vmem>>, %arg8: memref<8x128xf32, #tpu.memory_space<vmem>>) attributes {dimension_semantics = [#tpu.dimension_semantics<parallel>], iteration_bounds = array<i64: 1>, scalar_prefetch = 0 : i64, scratch_operands = 0 : i64, tpu.core_type = #tpu.core_type<tc>, window_params = [{transform_indices = @transform_0, window_bounds = array<i64: 8, 1024>}, {pipeline_mode = #tpu.pipeline_mode<synchronous>, transform_indices = @transform_1, window_bounds = array<i64: 1024, 512>}, {pipeline_mode = #tpu.pipeline_mode<synchronous>, transform_indices = @transform_2, window_bounds = array<i64: 1, 512>}, {pipeline_mode = #tpu.pipeline_mode<synchronous>, transform_indices = @transform_3, window_bounds = array<i64: 512, 256>}, {pipeline_mode = #tpu.pipeline_mode<synchronous>, transform_indices = @transform_4, window_bounds = array<i64: 1, 256>}, {pipeline_mode = #tpu.pipeline_mode<synchronous>, transform_indices = @transform_5, window_bounds = array<i64: 256, 128>}, {pipeline_mode = #tpu.pipeline_mode<synchronous>, transform_indices = @transform_6, window_bounds = array<i64: 1, 128>}, {transform_indices = @transform_7, window_bounds = array<i64: 8, 128>}]} {
    %c0 = arith.constant 0 : index
    %c0_0 = arith.constant 0 : index
    %0 = vector.load %arg1[%c0, %c0_0] : memref<8x1024xbf16, #tpu.memory_space<vmem>>, vector<8x1024xbf16>
    %c0_1 = arith.constant 0 : index
    %c0_2 = arith.constant 0 : index
    %1 = vector.load %arg2[%c0_1, %c0_2] : memref<1024x512xbf16, #tpu.memory_space<vmem>>, vector<1024x512xbf16>
    %cst = arith.constant dense<0.000000e+00> : vector<8x512xf32>
    %2 = tpu.matmul %0, %1, %cst {dimension_numbers = #tpu.dot_dimension_numbers<[1], [0], [0], [1], [0, 0, 1, 1], [], []>} : vector<8x1024xbf16>, vector<1024x512xbf16>, vector<8x512xf32> -> vector<8x512xf32>
    %c0_3 = arith.constant 0 : index
    %c0_4 = arith.constant 0 : index
    %3 = vector.load %arg3[%c0_3, %c0_4] : memref<1x512xf32, #tpu.memory_space<vmem>>, vector<1x512xf32>
    %4 = vector.broadcast %3 : vector<1x512xf32> to vector<8x512xf32>
    %5 = arith.addf %2, %4 : vector<8x512xf32>
    %cst_5 = arith.constant 0.000000e+00 : f32
    %6 = vector.broadcast %cst_5 : f32 to vector<8x512xf32>
    %7 = arith.maximumf %5, %6 : vector<8x512xf32>
    %8 = arith.truncf %7 : vector<8x512xf32> to vector<8x512xbf16>
    %c0_6 = arith.constant 0 : index
    %c0_7 = arith.constant 0 : index
    %9 = vector.load %arg4[%c0_6, %c0_7] : memref<512x256xbf16, #tpu.memory_space<vmem>>, vector<512x256xbf16>
    %cst_8 = arith.constant dense<0.000000e+00> : vector<8x256xf32>
    %10 = tpu.matmul %8, %9, %cst_8 {dimension_numbers = #tpu.dot_dimension_numbers<[1], [0], [0], [1], [0, 0, 1, 1], [], []>} : vector<8x512xbf16>, vector<512x256xbf16>, vector<8x256xf32> -> vector<8x256xf32>
    %c0_9 = arith.constant 0 : index
    %c0_10 = arith.constant 0 : index
    %11 = vector.load %arg5[%c0_9, %c0_10] : memref<1x256xf32, #tpu.memory_space<vmem>>, vector<1x256xf32>
    %12 = vector.broadcast %11 : vector<1x256xf32> to vector<8x256xf32>
    %13 = arith.addf %10, %12 : vector<8x256xf32>
    %cst_11 = arith.constant 0.000000e+00 : f32
    %14 = vector.broadcast %cst_11 : f32 to vector<8x256xf32>
    %15 = arith.maximumf %13, %14 : vector<8x256xf32>
    %16 = arith.truncf %15 : vector<8x256xf32> to vector<8x256xbf16>
    %c0_12 = arith.constant 0 : index
    %c0_13 = arith.constant 0 : index
    %17 = vector.load %arg6[%c0_12, %c0_13] : memref<256x128xbf16, #tpu.memory_space<vmem>>, vector<256x128xbf16>
    %cst_14 = arith.constant dense<0.000000e+00> : vector<8x128xf32>
    %18 = tpu.matmul %16, %17, %cst_14 {dimension_numbers = #tpu.dot_dimension_numbers<[1], [0], [0], [1], [0, 0, 1, 1], [], []>} : vector<8x256xbf16>, vector<256x128xbf16>, vector<8x128xf32> -> vector<8x128xf32>
    %c0_15 = arith.constant 0 : index
    %c0_16 = arith.constant 0 : index
    %19 = vector.load %arg7[%c0_15, %c0_16] : memref<1x128xf32, #tpu.memory_space<vmem>>, vector<1x128xf32>
    %20 = vector.broadcast %19 : vector<1x128xf32> to vector<8x128xf32>
    %21 = arith.addf %18, %20 : vector<8x128xf32>
    %c0_17 = arith.constant 0 : index
    %c0_18 = arith.constant 0 : index
    %22 = vector.load %arg8[%c0_17, %c0_18] : memref<8x128xf32, #tpu.memory_space<vmem>>, vector<8x128xf32>
    tpu.vector_store %arg8[%c0_17, %c0_18], %21 {strides = array<i32>} : memref<8x128xf32, #tpu.memory_space<vmem>>, vector<8x128xf32>,
    return
  }
  func.func @transform_0(%arg0: i32) -> (i32, i32) {
    %c0_i32 = arith.constant 0 : i32
    %c0_i32_0 = arith.constant 0 : i32
    return %arg0, %c0_i32 : i32, i32
  }
  func.func @transform_1(%arg0: i32) -> (i32, i32) {
    %c0_i32 = arith.constant 0 : i32
    %c0_i32_0 = arith.constant 0 : i32
    %c0_i32_1 = arith.constant 0 : i32
    return %c0_i32, %c0_i32_0 : i32, i32
  }
  func.func @transform_2(%arg0: i32) -> (i32, i32) {
    %c0_i32 = arith.constant 0 : i32
    %c0_i32_0 = arith.constant 0 : i32
    %c0_i32_1 = arith.constant 0 : i32
    return %c0_i32, %c0_i32_0 : i32, i32
  }
  func.func @transform_3(%arg0: i32) -> (i32, i32) {
    %c0_i32 = arith.constant 0 : i32
    %c0_i32_0 = arith.constant 0 : i32
    %c0_i32_1 = arith.constant 0 : i32
    return %c0_i32, %c0_i32_0 : i32, i32
  }
  func.func @transform_4(%arg0: i32) -> (i32, i32) {
    %c0_i32 = arith.constant 0 : i32
    %c0_i32_0 = arith.constant 0 : i32
    %c0_i32_1 = arith.constant 0 : i32
    return %c0_i32, %c0_i32_0 : i32, i32
  }
  func.func @transform_5(%arg0: i32) -> (i32, i32) {
    %c0_i32 = arith.constant 0 : i32
    %c0_i32_0 = arith.constant 0 : i32
    %c0_i32_1 = arith.constant 0 : i32
    return %c0_i32, %c0_i32_0 : i32, i32
  }
  func.func @transform_6(%arg0: i32) -> (i32, i32) {
    %c0_i32 = arith.constant 0 : i32
    %c0_i32_0 = arith.constant 0 : i32
    %c0_i32_1 = arith.constant 0 : i32
    return %c0_i32, %c0_i32_0 : i32, i32
  }
  func.func @transform_7(%arg0: i32) -> (i32, i32) {
    %c0_i32 = arith.constant 0 : i32
    %c0_i32_0 = arith.constant 0 : i32
    return %arg0, %c0_i32 : i32, i32
  }
}

</mosaic_0001>

<llo_original>
// kernel: model_head.1
$region0: #{model_head.1}
  #allocation0 [shape = 'u32[]', space=smem, size = 0x4, offset = 0x4, fixed_abs, tag = 'smem constant byte address 0x4 - core index']
  #allocation1 [shape = 'u32[72,128]{1,0:T(1,128)}', space=vmem, size = 0x9000, scoped, tag = 'internal scratch']
  %s0 = inlined_call_operand.vmem [shape: bf16[8,1024], index: 0, kind: input, shape index: {}]
  %s1 = inlined_call_operand.hbm [shape: bf16[1024,512], index: 1, kind: input, shape index: {}]
  %s2 = inlined_call_operand.vmem [shape: f32[1,512], index: 2, kind: input, shape index: {}]
  %s3 = inlined_call_operand.hbm [shape: bf16[512,256], index: 3, kind: input, shape index: {}]
  %s4 = inlined_call_operand.vmem [shape: f32[1,256], index: 4, kind: input, shape index: {}]
  %s5 = inlined_call_operand.hbm [shape: bf16[256,128], index: 5, kind: input, shape index: {}]
  %s6 = inlined_call_operand.vmem [shape: f32[1,128], index: 6, kind: input, shape index: {}]
  %s7 = inlined_call_operand.vmem [shape: f32[8,128], index: 7, kind: output, shape index: {}]
  %s8 = sld [smem:[#allocation0]]
  $region50: #{model_head.1} parent=0
    _
  %s10 = ssub.s32 1, %s8
  %s11 = scalar_select 0, %s10, %s8
  $region1: #{model_head.1} parent=0
    #allocation2 [shape = 'u8[1048576]{0}', space=vmem, size = 0x100000, scoped, tag = 'input window, operand 1, single buffered']
    #allocation3 [shape = 's32[1]{0}', space=sflag, size = 0x4, scoped, tag = 'scoped memory for model_head.1']
    #allocation4 [shape = 'u8[262144]{0}', space=vmem, size = 0x40000, scoped, tag = 'input window, operand 3, single buffered']
    #allocation5 [shape = 's32[1]{0}', space=sflag, size = 0x4, scoped, tag = 'scoped memory for model_head.1']
    #allocation6 [shape = 'u8[65536]{0}', space=vmem, size = 0x10000, scoped, tag = 'input window, operand 5, single buffered']
    %12 = vsyncpa [#allocation3], 0
    %13 = vsyncpa [#allocation5], 0
    // Predicated region
    $region2: #{model_head.1} parent=1 // pred_check
      _
    $region3: #{model_head.1} parent=1 // pred_check_branch
      %15 = sbr.rel (0) target = $region5
    $region4: #{model_head.1} parent=1 // pred_region
      _
    $region5: #{model_head.1} parent=1 // pred_fallthru
      _
    // Predicated region
    $region6: #{model_head.1} parent=1 // pred_check
      _
    $region7: #{model_head.1} parent=1 // pred_check_branch
      %17 = sbr.rel (0) target = $region9
    $region8: #{model_head.1} parent=1 // pred_region
      %19 = vsyncadd [#allocation3], 0
      %s20 = sshll.u32 %s1, 4
      %s21 = int_to_ptr.hbm [resolvable:$true] %s20
      %s22 = sshll.u32 [#allocation2], 4
      %s23 = int_to_ptr.vmem [resolvable:$true] %s22
      %28 = dma.hbm_to_vmem [thread:$0]  %s21, 32768, %s23, [#allocation3], 256, 256, 16
    $region9: #{model_head.1} parent=1 // pred_fallthru
      _
    // Predicated region
    $region10: #{model_head.1} parent=1 // pred_check
      _
    $region11: #{model_head.1} parent=1 // pred_check_branch
      %30 = sbr.rel (0) target = $region13
    $region12: #{model_head.1} parent=1 // pred_region
      _
    $region13: #{model_head.1} parent=1 // pred_fallthru
      _
    // Predicated region
    $region14: #{model_head.1} parent=1 // pred_check
      _
    $region15: #{model_head.1} parent=1 // pred_check_branch
      %32 = sbr.rel (0) target = $region17
    $region16: #{model_head.1} parent=1 // pred_region
      %34 = vsyncadd [#allocation5], 0
      %s35 = sshll.u32 %s3, 4
      %s36 = int_to_ptr.hbm [resolvable:$true] %s35
      %s37 = sshll.u32 [#allocation4], 4
      %s38 = int_to_ptr.vmem [resolvable:$true] %s37
      %43 = dma.hbm_to_vmem [thread:$0]  %s36, 8192, %s38, [#allocation5], 128, 128, 8
    $region17: #{model_head.1} parent=1 // pred_fallthru
      _
    // Predicated region
    $region18: #{model_head.1} parent=1 // pred_check
      _
    $region19: #{model_head.1} parent=1 // pred_check_branch
      %45 = sbr.rel (0) target = $region21
    $region20: #{model_head.1} parent=1 // pred_region
      _
    $region21: #{model_head.1} parent=1 // pred_fallthru
      _
    // Predicated region
    $region22: #{model_head.1} parent=1 // pred_check
      _
    $region23: #{model_head.1} parent=1 // pred_check_branch
      %47 = sbr.rel (0) target = $region25
    $region24: #{model_head.1} parent=1 // pred_region
      %49 = vsyncadd [#allocation5], 0
      %s50 = sshll.u32 %s5, 4
      %s51 = int_to_ptr.hbm [resolvable:$true] %s50
      %s52 = sshll.u32 [#allocation6], 4
      %s53 = int_to_ptr.vmem [resolvable:$true] %s52
      %58 = dma.hbm_to_vmem [thread:$0]  %s51, 2048, %s53, [#allocation5], 64, 64, 4
    $region25: #{model_head.1} parent=1 // pred_fallthru
      _
    // Predicated region
    $region26: #{model_head.1} parent=1 // pred_check
      _
    $region27: #{model_head.1} parent=1 // pred_check_branch
      %60 = sbr.rel (0) target = $region29
    $region28: #{model_head.1} parent=1 // pred_region
      _
    $region29: #{model_head.1} parent=1 // pred_fallthru
      _
    // Predicated region
    $region30: #{model_head.1} parent=1 // pred_check
      _
    $region31: #{model_head.1} parent=1 // pred_check_branch
      %62 = sbr.rel (0) target = $region33
    $region32: #{model_head.1} parent=1 // pred_region
      %64 = dma.done [#allocation3], 32768
    $region33: #{model_head.1} parent=1 // pred_fallthru
      _
    // Predicated region
    $region34: #{model_head.1} parent=1 // pred_check
      _
    $region35: #{model_head.1} parent=1 // pred_check_branch
      %66 = sbr.rel (0) target = $region37
    $region36: #{model_head.1} parent=1 // pred_region
      %68 = dma.done [#allocation5], 8192
    $region37: #{model_head.1} parent=1 // pred_fallthru
      _
    // Predicated region
    $region38: #{model_head.1} parent=1 // pred_check
      _
    $region39: #{model_head.1} parent=1 // pred_check_branch
      %70 = sbr.rel (0) target = $region41
    $region40: #{model_head.1} parent=1 // pred_region
      %72 = dma.done [#allocation5], 2048
    $region41: #{model_head.1} parent=1 // pred_fallthru
      _
    %v73 = vld [vmem:[%s0] sm:$0xff]
    %v74 = vld [vmem:[%s0 + $0x8] sm:$0xff]
    %v75 = vld [vmem:[%s0 + $0x10] sm:$0xff]
    %v76 = vld [vmem:[%s0 + $0x18] sm:$0xff]
    %v77 = vld [vmem:[#allocation2] sm:$0xff]
    %v78 = vld [vmem:[#allocation2 + $0x8] sm:$0xff]
    %v79 = vld [vmem:[#allocation2 + $0x10] sm:$0xff]
    %v80 = vld [vmem:[#allocation2 + $0x18] sm:$0xff]
    %v81 = vld [vmem:[#allocation2 + $0x20] sm:$0xff]
    %v82 = vld [vmem:[#allocation2 + $0x28] sm:$0xff]
    %v83 = vld [vmem:[#allocation2 + $0x30] sm:$0xff]
    %v84 = vld [vmem:[#allocation2 + $0x38] sm:$0xff]
    %v85 = vld [vmem:[#allocation2 + $0x40] sm:$0xff]
    %v86 = vld [vmem:[#allocation2 + $0x48] sm:$0xff]
    %v87 = vld [vmem:[#allocation2 + $0x50] sm:$0xff]
    %v88 = vld [vmem:[#allocation2 + $0x58] sm:$0xff]
    %v89 = vld [vmem:[#allocation2 + $0x60] sm:$0xff]
    %v90 = vld [vmem:[#allocation2 + $0x68] sm:$0xff]
    %v91 = vld [vmem:[#allocation2 + $0x70] sm:$0xff]
    %v92 = vld [vmem:[#allocation2 + $0x78] sm:$0xff]
    %v93 = vld [vmem:[#allocation2 + $0x80] sm:$0xff]
    %v94 = vld [vmem:[#allocation2 + $0x88] sm:$0xff]
    %v95 = vld [vmem:[#allocation2 + $0x90] sm:$0xff]
    %v96 = vld [vmem:[#allocation2 + $0x98] sm:$0xff]
    %v97 = vld [vmem:[#allocation2 + $0xa0] sm:$0xff]
    %v98 = vld [vmem:[#allocation2 + $0xa8] sm:$0xff]
    %v99 = vld [vmem:[#allocation2 + $0xb0] sm:$0xff]
    %v100 = vld [vmem:[#allocation2 + $0xb8] sm:$0xff]
    %v101 = vld [vmem:[#allocation2 + $0xc0] sm:$0xff]
    %v102 = vld [vmem:[#allocation2 + $0xc8] sm:$0xff]
    %v103 = vld [vmem:[#allocation2 + $0xd0] sm:$0xff]
    %v104 = vld [vmem:[#allocation2 + $0xd8] sm:$0xff]
    %v105 = vld [vmem:[#allocation2 + $0xe0] sm:$0xff]
    %v106 = vld [vmem:[#allocation2 + $0xe8] sm:$0xff]
    %v107 = vld [vmem:[#allocation2 + $0xf0] sm:$0xff]
    %v108 = vld [vmem:[#allocation2 + $0xf8] sm:$0xff]
    %v109 = vld [vmem:[#allocation2 + $0x100] sm:$0xff]
    %v110 = vld [vmem:[#allocation2 + $0x108] sm:$0xff]
    %v111 = vld [vmem:[#allocation2 + $0x110] sm:$0xff]
    %v112 = vld [vmem:[#allocation2 + $0x118] sm:$0xff]
    %v113 = vld [vmem:[#allocation2 + $0x120] sm:$0xff]
    %v114 = vld [vmem:[#allocation2 + $0x128] sm:$0xff]
    %v115 = vld [vmem:[#allocation2 + $0x130] sm:$0xff]
    %v116 = vld [vmem:[#allocation2 + $0x138] sm:$0xff]
    %v117 = vld [vmem:[#allocation2 + $0x140] sm:$0xff]
    %v118 = vld [vmem:[#allocation2 + $0x148] sm:$0xff]
    %v119 = vld [vmem:[#allocation2 + $0x150] sm:$0xff]
    %v120 = vld [vmem:[#allocation2 + $0x158] sm:$0xff]
    %v121 = vld [vmem:[#allocation2 + $0x160] sm:$0xff]
    %v122 = vld [vmem:[#allocation2 + $0x168] sm:$0xff]
    %v123 = vld [vmem:[#allocation2 + $0x170] sm:$0xff]
    %v124 = vld [vmem:[#allocation2 + $0x178] sm:$0xff]
    %v125 = vld [vmem:[#allocation2 + $0x180] sm:$0xff]
    %v126 = vld [vmem:[#allocation2 + $0x188] sm:$0xff]
    %v127 = vld [vmem:[#allocation2 + $0x190] sm:$0xff]
    %v128 = vld [vmem:[#allocation2 + $0x198] sm:$0xff]
    %v129 = vld [vmem:[#allocation2 + $0x1a0] sm:$0xff]
    %v130 = vld [vmem:[#allocation2 + $0x1a8] sm:$0xff]
    %v131 = vld [vmem:[#allocation2 + $0x1b0] sm:$0xff]
    %v132 = vld [vmem:[#allocation2 + $0x1b8] sm:$0xff]
    %v133 = vld [vmem:[#allocation2 + $0x1c0] sm:$0xff]
    %v134 = vld [vmem:[#allocation2 + $0x1c8] sm:$0xff]
    %v135 = vld [vmem:[#allocation2 + $0x1d0] sm:$0xff]
    %v136 = vld [vmem:[#allocation2 + $0x1d8] sm:$0xff]
    %v137 = vld [vmem:[#allocation2 + $0x1e0] sm:$0xff]
    %v138 = vld [vmem:[#allocation2 + $0x1e8] sm:$0xff]
    %v139 = vld [vmem:[#allocation2 + $0x1f0] sm:$0xff]
    %v140 = vld [vmem:[#allocation2 + $0x1f8] sm:$0xff]
    %v141 = vld [vmem:[#allocation2 + $0x200] sm:$0xff]
    %v142 = vld [vmem:[#allocation2 + $0x208] sm:$0xff]
    %v143 = vld [vmem:[#allocation2 + $0x210] sm:$0xff]
    %v144 = vld [vmem:[#allocation2 + $0x218] sm:$0xff]
    %v145 = vld [vmem:[#allocation2 + $0x220] sm:$0xff]
    %v146 = vld [vmem:[#allocation2 + $0x228] sm:$0xff]
    %v147 = vld [vmem:[#allocation2 + $0x230] sm:$0xff]
    %v148 = vld [vmem:[#allocation2 + $0x238] sm:$0xff]
    %v149 = vld [vmem:[#allocation2 + $0x240] sm:$0xff]
    %v150 = vld [vmem:[#allocation2 + $0x248] sm:$0xff]
    %v151 = vld [vmem:[#allocation2 + $0x250] sm:$0xff]
    %v152 = vld [vmem:[#allocation2 + $0x258] sm:$0xff]
    %v153 = vld [vmem:[#allocation2 + $0x260] sm:$0xff]
    %v154 = vld [vmem:[#allocation2 + $0x268] sm:$0xff]
    %v155 = vld [vmem:[#allocation2 + $0x270] sm:$0xff]
    %v156 = vld [vmem:[#allocation2 + $0x278] sm:$0xff]
    %v157 = vld [vmem:[#allocation2 + $0x280] sm:$0xff]
    %v158 = vld [vmem:[#allocation2 + $0x288] sm:$0xff]
    %v159 = vld [vmem:[#allocation2 + $0x290] sm:$0xff]
    %v160 = vld [vmem:[#allocation2 + $0x298] sm:$0xff]
    %v161 = vld [vmem:[#allocation2 + $0x2a0] sm:$0xff]
    %v162 = vld [vmem:[#allocation2 + $0x2a8] sm:$0xff]
    %v163 = vld [vmem:[#allocation2 + $0x2b0] sm:$0xff]
    %v164 = vld [vmem:[#allocation2 + $0x2b8] sm:$0xff]
    %v165 = vld [vmem:[#allocation2 + $0x2c0] sm:$0xff]
    %v166 = vld [vmem:[#allocation2 + $0x2c8] sm:$0xff]
    %v167 = vld [vmem:[#allocation2 + $0x2d0] sm:$0xff]
    %v168 = vld [vmem:[#allocation2 + $0x2d8] sm:$0xff]
    %v169 = vld [vmem:[#allocation2 + $0x2e0] sm:$0xff]
    %v170 = vld [vmem:[#allocation2 + $0x2e8] sm:$0xff]
    %v171 = vld [vmem:[#allocation2 + $0x2f0] sm:$0xff]
    %v172 = vld [vmem:[#allocation2 + $0x2f8] sm:$0xff]
    %v173 = vld [vmem:[#allocation2 + $0x300] sm:$0xff]
    %v174 = vld [vmem:[#allocation2 + $0x308] sm:$0xff]
    %v175 = vld [vmem:[#allocation2 + $0x310] sm:$0xff]
    %v176 = vld [vmem:[#allocation2 + $0x318] sm:$0xff]
    %v177 = vld [vmem:[#allocation2 + $0x320] sm:$0xff]
    %v178 = vld [vmem:[#allocation2 + $0x328] sm:$0xff]
    %v179 = vld [vmem:[#allocation2 + $0x330] sm:$0xff]
    %v180 = vld [vmem:[#allocation2 + $0x338] sm:$0xff]
    %v181 = vld [vmem:[#allocation2 + $0x340] sm:$0xff]
    %v182 = vld [vmem:[#allocation2 + $0x348] sm:$0xff]
    %v183 = vld [vmem:[#allocation2 + $0x350] sm:$0xff]
    %v184 = vld [vmem:[#allocation2 + $0x358] sm:$0xff]
    %v185 = vld [vmem:[#allocation2 + $0x360] sm:$0xff]
    %v186 = vld [vmem:[#allocation2 + $0x368] sm:$0xff]
    %v187 = vld [vmem:[#allocation2 + $0x370] sm:$0xff]
    %v188 = vld [vmem:[#allocation2 + $0x378] sm:$0xff]
    %v189 = vld [vmem:[#allocation2 + $0x380] sm:$0xff]
    %v190 = vld [vmem:[#allocation2 + $0x388] sm:$0xff]
    %v191 = vld [vmem:[#allocation2 + $0x390] sm:$0xff]
    %v192 = vld [vmem:[#allocation2 + $0x398] sm:$0xff]
    %v193 = vld [vmem:[#allocation2 + $0x3a0] sm:$0xff]
    %v194 = vld [vmem:[#allocation2 + $0x3a8] sm:$0xff]
    %v195 = vld [vmem:[#allocation2 + $0x3b0] sm:$0xff]
    %v196 = vld [vmem:[#allocation2 + $0x3b8] sm:$0xff]
    %v197 = vld [vmem:[#allocation2 + $0x3c0] sm:$0xff]
    %v198 = vld [vmem:[#allocation2 + $0x3c8] sm:$0xff]
    %v199 = vld [vmem:[#allocation2 + $0x3d0] sm:$0xff]
    %v200 = vld [vmem:[#allocation2 + $0x3d8] sm:$0xff]
    %v201 = vld [vmem:[#allocation2 + $0x3e0] sm:$0xff]
    %v202 = vld [vmem:[#allocation2 + $0x3e8] sm:$0xff]
    %v203 = vld [vmem:[#allocation2 + $0x3f0] sm:$0xff]
    %v204 = vld [vmem:[#allocation2 + $0x3f8] sm:$0xff]
    %v205 = vld [vmem:[#allocation2 + $0x400] sm:$0xff]
    %v206 = vld [vmem:[#allocation2 + $0x408] sm:$0xff]
    %v207 = vld [vmem:[#allocation2 + $0x410] sm:$0xff]
    %v208 = vld [vmem:[#allocation2 + $0x418] sm:$0xff]
    %v209 = vld [vmem:[#allocation2 + $0x420] sm:$0xff]
    %v210 = vld [vmem:[#allocation2 + $0x428] sm:$0xff]
    %v211 = vld [vmem:[#allocation2 + $0x430] sm:$0xff]
    %v212 = vld [vmem:[#allocation2 + $0x438] sm:$0xff]
    %v213 = vld [vmem:[#allocation2 + $0x440] sm:$0xff]
    %v214 = vld [vmem:[#allocation2 + $0x448] sm:$0xff]
    %v215 = vld [vmem:[#allocation2 + $0x450] sm:$0xff]
    %v216 = vld [vmem:[#allocation2 + $0x458] sm:$0xff]
    %v217 = vld [vmem:[#allocation2 + $0x460] sm:$0xff]
    %v218 = vld [vmem:[#allocation2 + $0x468] sm:$0xff]
    %v219 = vld [vmem:[#allocation2 + $0x470] sm:$0xff]
    %v220 = vld [vmem:[#allocation2 + $0x478] sm:$0xff]
    %v221 = vld [vmem:[#allocation2 + $0x480] sm:$0xff]
    %v222 = vld [vmem:[#allocation2 + $0x488] sm:$0xff]
    %v223 = vld [vmem:[#allocation2 + $0x490] sm:$0xff]
    %v224 = vld [vmem:[#allocation2 + $0x498] sm:$0xff]
    %v225 = vld [vmem:[#allocation2 + $0x4a0] sm:$0xff]
    %v226 = vld [vmem:[#allocation2 + $0x4a8] sm:$0xff]
    %v227 = vld [vmem:[#allocation2 + $0x4b0] sm:$0xff]
    %v228 = vld [vmem:[#allocation2 + $0x4b8] sm:$0xff]
    %v229 = vld [vmem:[#allocation2 + $0x4c0] sm:$0xff]
    %v230 = vld [vmem:[#allocation2 + $0x4c8] sm:$0xff]
    %v231 = vld [vmem:[#allocation2 + $0x4d0] sm:$0xff]
    %v232 = vld [vmem:[#allocation2 + $0x4d8] sm:$0xff]
    %v233 = vld [vmem:[#allocation2 + $0x4e0] sm:$0xff]
    %v234 = vld [vmem:[#allocation2 + $0x4e8] sm:$0xff]
    %v235 = vld [vmem:[#allocation2 + $0x4f0] sm:$0xff]
    %v236 = vld [vmem:[#allocation2 + $0x4f8] sm:$0xff]
    %v237 = vld [vmem:[#allocation2 + $0x500] sm:$0xff]
    %v238 = vld [vmem:[#allocation2 + $0x508] sm:$0xff]
    %v239 = vld [vmem:[#allocation2 + $0x510] sm:$0xff]
    %v240 = vld [vmem:[#allocation2 + $0x518] sm:$0xff]
    %v241 = vld [vmem:[#allocation2 + $0x520] sm:$0xff]
    %v242 = vld [vmem:[#allocation2 + $0x528] sm:$0xff]
    %v243 = vld [vmem:[#allocation2 + $0x530] sm:$0xff]
    %v244 = vld [vmem:[#allocation2 + $0x538] sm:$0xff]
    %v245 = vld [vmem:[#allocation2 + $0x540] sm:$0xff]
    %v246 = vld [vmem:[#allocation2 + $0x548] sm:$0xff]
    %v247 = vld [vmem:[#allocation2 + $0x550] sm:$0xff]
    %v248 = vld [vmem:[#allocation2 + $0x558] sm:$0xff]
    %v249 = vld [vmem:[#allocation2 + $0x560] sm:$0xff]
    %v250 = vld [vmem:[#allocation2 + $0x568] sm:$0xff]
    %v251 = vld [vmem:[#allocation2 + $0x570] sm:$0xff]
    %v252 = vld [vmem:[#allocation2 + $0x578] sm:$0xff]
    %v253 = vld [vmem:[#allocation2 + $0x580] sm:$0xff]
    %v254 = vld [vmem:[#allocation2 + $0x588] sm:$0xff]
    %v255 = vld [vmem:[#allocation2 + $0x590] sm:$0xff]
    %v256 = vld [vmem:[#allocation2 + $0x598] sm:$0xff]
    %v257 = vld [vmem:[#allocation2 + $0x5a0] sm:$0xff]
    %v258 = vld [vmem:[#allocation2 + $0x5a8] sm:$0xff]
    %v259 = vld [vmem:[#allocation2 + $0x5b0] sm:$0xff]
    %v260 = vld [vmem:[#allocation2 + $0x5b8] sm:$0xff]
    %v261 = vld [vmem:[#allocation2 + $0x5c0] sm:$0xff]
    %v262 = vld [vmem:[#allocation2 + $0x5c8] sm:$0xff]
    %v263 = vld [vmem:[#allocation2 + $0x5d0] sm:$0xff]
    %v264 = vld [vmem:[#allocation2 + $0x5d8] sm:$0xff]
    %v265 = vld [vmem:[#allocation2 + $0x5e0] sm:$0xff]
    %v266 = vld [vmem:[#allocation2 + $0x5e8] sm:$0xff]
    %v267 = vld [vmem:[#allocation2 + $0x5f0] sm:$0xff]
    %v268 = vld [vmem:[#allocation2 + $0x5f8] sm:$0xff]
    %v269 = vld [vmem:[#allocation2 + $0x600] sm:$0xff]
    %v270 = vld [vmem:[#allocation2 + $0x608] sm:$0xff]
    %v271 = vld [vmem:[#allocation2 + $0x610] sm:$0xff]
    %v272 = vld [vmem:[#allocation2 + $0x618] sm:$0xff]
    %v273 = vld [vmem:[#allocation2 + $0x620] sm:$0xff]
    %v274 = vld [vmem:[#allocation2 + $0x628] sm:$0xff]
    %v275 = vld [vmem:[#allocation2 + $0x630] sm:$0xff]
    %v276 = vld [vmem:[#allocation2 + $0x638] sm:$0xff]
    %v277 = vld [vmem:[#allocation2 + $0x640] sm:$0xff]
    %v278 = vld [vmem:[#allocation2 + $0x648] sm:$0xff]
    %v279 = vld [vmem:[#allocation2 + $0x650] sm:$0xff]
    %v280 = vld [vmem:[#allocation2 + $0x658] sm:$0xff]
    %v281 = vld [vmem:[#allocation2 + $0x660] sm:$0xff]
    %v282 = vld [vmem:[#allocation2 + $0x668] sm:$0xff]
    %v283 = vld [vmem:[#allocation2 + $0x670] sm:$0xff]
    %v284 = vld [vmem:[#allocation2 + $0x678] sm:$0xff]
    %v285 = vld [vmem:[#allocation2 + $0x680] sm:$0xff]
    %v286 = vld [vmem:[#allocation2 + $0x688] sm:$0xff]
    %v287 = vld [vmem:[#allocation2 + $0x690] sm:$0xff]
    %v288 = vld [vmem:[#allocation2 + $0x698] sm:$0xff]
    %v289 = vld [vmem:[#allocation2 + $0x6a0] sm:$0xff]
    %v290 = vld [vmem:[#allocation2 + $0x6a8] sm:$0xff]
    %v291 = vld [vmem:[#allocation2 + $0x6b0] sm:$0xff]
    %v292 = vld [vmem:[#allocation2 + $0x6b8] sm:$0xff]
    %v293 = vld [vmem:[#allocation2 + $0x6c0] sm:$0xff]
    %v294 = vld [vmem:[#allocation2 + $0x6c8] sm:$0xff]
    %v295 = vld [vmem:[#allocation2 + $0x6d0] sm:$0xff]
    %v296 = vld [vmem:[#allocation2 + $0x6d8] sm:$0xff]
    %v297 = vld [vmem:[#allocation2 + $0x6e0] sm:$0xff]
    %v298 = vld [vmem:[#allocation2 + $0x6e8] sm:$0xff]
    %v299 = vld [vmem:[#allocation2 + $0x6f0] sm:$0xff]
    %v300 = vld [vmem:[#allocation2 + $0x6f8] sm:$0xff]
    %v301 = vld [vmem:[#allocation2 + $0x700] sm:$0xff]
    %v302 = vld [vmem:[#allocation2 + $0x708] sm:$0xff]
    %v303 = vld [vmem:[#allocation2 + $0x710] sm:$0xff]
    %v304 = vld [vmem:[#allocation2 + $0x718] sm:$0xff]
    %v305 = vld [vmem:[#allocation2 + $0x720] sm:$0xff]
    %v306 = vld [vmem:[#allocation2 + $0x728] sm:$0xff]
    %v307 = vld [vmem:[#allocation2 + $0x730] sm:$0xff]
    %v308 = vld [vmem:[#allocation2 + $0x738] sm:$0xff]
    %v309 = vld [vmem:[#allocation2 + $0x740] sm:$0xff]
    %v310 = vld [vmem:[#allocation2 + $0x748] sm:$0xff]
    %v311 = vld [vmem:[#allocation2 + $0x750] sm:$0xff]
    %v312 = vld [vmem:[#allocation2 + $0x758] sm:$0xff]
    %v313 = vld [vmem:[#allocation2 + $0x760] sm:$0xff]
    %v314 = vld [vmem:[#allocation2 + $0x768] sm:$0xff]
    %v315 = vld [vmem:[#allocation2 + $0x770] sm:$0xff]
    %v316 = vld [vmem:[#allocation2 + $0x778] sm:$0xff]
    %v317 = vld [vmem:[#allocation2 + $0x780] sm:$0xff]
    %v318 = vld [vmem:[#allocation2 + $0x788] sm:$0xff]
    %v319 = vld [vmem:[#allocation2 + $0x790] sm:$0xff]
    %v320 = vld [vmem:[#allocation2 + $0x798] sm:$0xff]
    %v321 = vld [vmem:[#allocation2 + $0x7a0] sm:$0xff]
    %v322 = vld [vmem:[#allocation2 + $0x7a8] sm:$0xff]
    %v323 = vld [vmem:[#allocation2 + $0x7b0] sm:$0xff]
    %v324 = vld [vmem:[#allocation2 + $0x7b8] sm:$0xff]
    %v325 = vld [vmem:[#allocation2 + $0x7c0] sm:$0xff]
    %v326 = vld [vmem:[#allocation2 + $0x7c8] sm:$0xff]
    %v327 = vld [vmem:[#allocation2 + $0x7d0] sm:$0xff]
    %v328 = vld [vmem:[#allocation2 + $0x7d8] sm:$0xff]
    %v329 = vld [vmem:[#allocation2 + $0x7e0] sm:$0xff]
    %v330 = vld [vmem:[#allocation2 + $0x7e8] sm:$0xff]
    %v331 = vld [vmem:[#allocation2 + $0x7f0] sm:$0xff]
    %v332 = vld [vmem:[#allocation2 + $0x7f8] sm:$0xff]
    %v333 = vld [vmem:[%s2] sm:$0xf]
    %v335 = vperm.slane %v333, 0
    %v336 = vperm.slane %v333, 1
    %v337 = vperm.slane %v333, 2
    %v338 = vperm.slane %v333, 3
    %v347 = vunpack.c.l.b16 %v73
    %v348 = vunpack.c.h.b16 %v73
    %v349 = vunpack.c.l.b16 %v74
    %v350 = vunpack.c.h.b16 %v74
    %v351 = vunpack.c.l.b16 %v75
    %v352 = vunpack.c.h.b16 %v75
    %v353 = vunpack.c.l.b16 %v76
    %v354 = vunpack.c.h.b16 %v76
    %v355 = vpack.c.b16 %v347, %v347
    %v356 = vpack.c.b16 %v348, %v348
    %v357 = vpack.c.b16 %v349, %v349
    %v358 = vpack.c.b16 %v350, %v350
    %v359 = vpack.c.b16 %v351, %v351
    %v360 = vpack.c.b16 %v352, %v352
    %v361 = vpack.c.b16 %v353, %v353
    %v362 = vpack.c.b16 %v354, %v354
    %v627 = vunpack.c.l.b16 %v77
    %v628 = vunpack.c.h.b16 %v77
    %v629 = vunpack.c.l.b16 %v78
    %v630 = vunpack.c.h.b16 %v78
    %v631 = vunpack.c.l.b16 %v79
    %v632 = vunpack.c.h.b16 %v79
    %v633 = vunpack.c.l.b16 %v80
    %v634 = vunpack.c.h.b16 %v80
    %v635 = vunpack.c.l.b16 %v81
    %v636 = vunpack.c.h.b16 %v81
    %v637 = vunpack.c.l.b16 %v82
    %v638 = vunpack.c.h.b16 %v82
    %v639 = vunpack.c.l.b16 %v83
    %v640 = vunpack.c.h.b16 %v83
    %v641 = vunpack.c.l.b16 %v84
    %v642 = vunpack.c.h.b16 %v84
    %v643 = vunpack.c.l.b16 %v85
    %v644 = vunpack.c.h.b16 %v85
    %v645 = vunpack.c.l.b16 %v86
    %v646 = vunpack.c.h.b16 %v86
    %v647 = vunpack.c.l.b16 %v87
    %v648 = vunpack.c.h.b16 %v87
    %v649 = vunpack.c.l.b16 %v88
    %v650 = vunpack.c.h.b16 %v88
    %v651 = vunpack.c.l.b16 %v89
    %v652 = vunpack.c.h.b16 %v89
    %v653 = vunpack.c.l.b16 %v90
    %v654 = vunpack.c.h.b16 %v90
    %v655 = vunpack.c.l.b16 %v91
    %v656 = vunpack.c.h.b16 %v91
    %v657 = vunpack.c.l.b16 %v92
    %v658 = vunpack.c.h.b16 %v92
    %v659 = vunpack.c.l.b16 %v93
    %v660 = vunpack.c.h.b16 %v93
    %v661 = vunpack.c.l.b16 %v94
    %v662 = vunpack.c.h.b16 %v94
    %v663 = vunpack.c.l.b16 %v95
    %v664 = vunpack.c.h.b16 %v95
    %v665 = vunpack.c.l.b16 %v96
    %v666 = vunpack.c.h.b16 %v96
    %v667 = vunpack.c.l.b16 %v97
    %v668 = vunpack.c.h.b16 %v97
    %v669 = vunpack.c.l.b16 %v98
    %v670 = vunpack.c.h.b16 %v98
    %v671 = vunpack.c.l.b16 %v99
    %v672 = vunpack.c.h.b16 %v99
    %v673 = vunpack.c.l.b16 %v100
    %v674 = vunpack.c.h.b16 %v100
    %v675 = vunpack.c.l.b16 %v101
    %v676 = vunpack.c.h.b16 %v101
    %v677 = vunpack.c.l.b16 %v102
    %v678 = vunpack.c.h.b16 %v102
    %v679 = vunpack.c.l.b16 %v103
    %v680 = vunpack.c.h.b16 %v103
    %v681 = vunpack.c.l.b16 %v104
    %v682 = vunpack.c.h.b16 %v104
    %v683 = vunpack.c.l.b16 %v105
    %v684 = vunpack.c.h.b16 %v105
    %v685 = vunpack.c.l.b16 %v106
    %v686 = vunpack.c.h.b16 %v106
    %v687 = vunpack.c.l.b16 %v107
    %v688 = vunpack.c.h.b16 %v107
    %v689 = vunpack.c.l.b16 %v108
    %v690 = vunpack.c.h.b16 %v108
    %v691 = vunpack.c.l.b16 %v109
    %v692 = vunpack.c.h.b16 %v109
    %v693 = vunpack.c.l.b16 %v110
    %v694 = vunpack.c.h.b16 %v110
    %v695 = vunpack.c.l.b16 %v111
    %v696 = vunpack.c.h.b16 %v111
    %v697 = vunpack.c.l.b16 %v112
    %v698 = vunpack.c.h.b16 %v112
    %v699 = vunpack.c.l.b16 %v113
    %v700 = vunpack.c.h.b16 %v113
    %v701 = vunpack.c.l.b16 %v114
    %v702 = vunpack.c.h.b16 %v114
    %v703 = vunpack.c.l.b16 %v115
    %v704 = vunpack.c.h.b16 %v115
    %v705 = vunpack.c.l.b16 %v116
    %v706 = vunpack.c.h.b16 %v116
    %v707 = vunpack.c.l.b16 %v117
    %v708 = vunpack.c.h.b16 %v117
    %v709 = vunpack.c.l.b16 %v118
    %v710 = vunpack.c.h.b16 %v118
    %v711 = vunpack.c.l.b16 %v119
    %v712 = vunpack.c.h.b16 %v119
    %v713 = vunpack.c.l.b16 %v120
    %v714 = vunpack.c.h.b16 %v120
    %v715 = vunpack.c.l.b16 %v121
    %v716 = vunpack.c.h.b16 %v121
    %v717 = vunpack.c.l.b16 %v122
    %v718 = vunpack.c.h.b16 %v122
    %v719 = vunpack.c.l.b16 %v123
    %v720 = vunpack.c.h.b16 %v123
    %v721 = vunpack.c.l.b16 %v124
    %v722 = vunpack.c.h.b16 %v124
    %v723 = vunpack.c.l.b16 %v125
    %v724 = vunpack.c.h.b16 %v125
    %v725 = vunpack.c.l.b16 %v126
    %v726 = vunpack.c.h.b16 %v126
    %v727 = vunpack.c.l.b16 %v127
    %v728 = vunpack.c.h.b16 %v127
    %v729 = vunpack.c.l.b16 %v128
    %v730 = vunpack.c.h.b16 %v128
    %v731 = vunpack.c.l.b16 %v129
    %v732 = vunpack.c.h.b16 %v129
    %v733 = vunpack.c.l.b16 %v130
    %v734 = vunpack.c.h.b16 %v130
    %v735 = vunpack.c.l.b16 %v131
    %v736 = vunpack.c.h.b16 %v131
    %v737 = vunpack.c.l.b16 %v132
    %v738 = vunpack.c.h.b16 %v132
    %v739 = vunpack.c.l.b16 %v133
    %v740 = vunpack.c.h.b16 %v133
    %v741 = vunpack.c.l.b16 %v134
    %v742 = vunpack.c.h.b16 %v134
    %v743 = vunpack.c.l.b16 %v135
    %v744 = vunpack.c.h.b16 %v135
    %v745 = vunpack.c.l.b16 %v136
    %v746 = vunpack.c.h.b16 %v136
    %v747 = vunpack.c.l.b16 %v137
    %v748 = vunpack.c.h.b16 %v137
    %v749 = vunpack.c.l.b16 %v138
    %v750 = vunpack.c.h.b16 %v138
    %v751 = vunpack.c.l.b16 %v139
    %v752 = vunpack.c.h.b16 %v139
    %v753 = vunpack.c.l.b16 %v140
    %v754 = vunpack.c.h.b16 %v140
    %v755 = vunpack.c.l.b16 %v141
    %v756 = vunpack.c.h.b16 %v141
    %v757 = vunpack.c.l.b16 %v142
    %v758 = vunpack.c.h.b16 %v142
    %v759 = vunpack.c.l.b16 %v143
    %v760 = vunpack.c.h.b16 %v143
    %v761 = vunpack.c.l.b16 %v144
    %v762 = vunpack.c.h.b16 %v144
    %v763 = vunpack.c.l.b16 %v145
    %v764 = vunpack.c.h.b16 %v145
    %v765 = vunpack.c.l.b16 %v146
    %v766 = vunpack.c.h.b16 %v146
    %v767 = vunpack.c.l.b16 %v147
    %v768 = vunpack.c.h.b16 %v147
    %v769 = vunpack.c.l.b16 %v148
    %v770 = vunpack.c.h.b16 %v148
    %v771 = vunpack.c.l.b16 %v149
    %v772 = vunpack.c.h.b16 %v149
    %v773 = vunpack.c.l.b16 %v150
    %v774 = vunpack.c.h.b16 %v150
    %v775 = vunpack.c.l.b16 %v151
    %v776 = vunpack.c.h.b16 %v151
    %v777 = vunpack.c.l.b16 %v152
    %v778 = vunpack.c.h.b16 %v152
    %v779 = vunpack.c.l.b16 %v153
    %v780 = vunpack.c.h.b16 %v153
    %v781 = vunpack.c.l.b16 %v154
    %v782 = vunpack.c.h.b16 %v154
    %v783 = vunpack.c.l.b16 %v155
    %v784 = vunpack.c.h.b16 %v155
    %v785 = vunpack.c.l.b16 %v156
    %v786 = vunpack.c.h.b16 %v156
    %v787 = vunpack.c.l.b16 %v157
    %v788 = vunpack.c.h.b16 %v157
    %v789 = vunpack.c.l.b16 %v158
    %v790 = vunpack.c.h.b16 %v158
    %v791 = vunpack.c.l.b16 %v159
    %v792 = vunpack.c.h.b16 %v159
    %v793 = vunpack.c.l.b16 %v160
    %v794 = vunpack.c.h.b16 %v160
    %v795 = vunpack.c.l.b16 %v161
    %v796 = vunpack.c.h.b16 %v161
    %v797 = vunpack.c.l.b16 %v162
    %v798 = vunpack.c.h.b16 %v162
    %v799 = vunpack.c.l.b16 %v163
    %v800 = vunpack.c.h.b16 %v163
    %v801 = vunpack.c.l.b16 %v164
    %v802 = vunpack.c.h.b16 %v164
    %v803 = vunpack.c.l.b16 %v165
    %v804 = vunpack.c.h.b16 %v165
    %v805 = vunpack.c.l.b16 %v166
    %v806 = vunpack.c.h.b16 %v166
    %v807 = vunpack.c.l.b16 %v167
    %v808 = vunpack.c.h.b16 %v167
    %v809 = vunpack.c.l.b16 %v168
    %v810 = vunpack.c.h.b16 %v168
    %v811 = vunpack.c.l.b16 %v169
    %v812 = vunpack.c.h.b16 %v169
    %v813 = vunpack.c.l.b16 %v170
    %v814 = vunpack.c.h.b16 %v170
    %v815 = vunpack.c.l.b16 %v171
    %v816 = vunpack.c.h.b16 %v171
    %v817 = vunpack.c.l.b16 %v172
    %v818 = vunpack.c.h.b16 %v172
    %v819 = vunpack.c.l.b16 %v173
    %v820 = vunpack.c.h.b16 %v173
    %v821 = vunpack.c.l.b16 %v174
    %v822 = vunpack.c.h.b16 %v174
    %v823 = vunpack.c.l.b16 %v175
    %v824 = vunpack.c.h.b16 %v175
    %v825 = vunpack.c.l.b16 %v176
    %v826 = vunpack.c.h.b16 %v176
    %v827 = vunpack.c.l.b16 %v177
    %v828 = vunpack.c.h.b16 %v177
    %v829 = vunpack.c.l.b16 %v178
    %v830 = vunpack.c.h.b16 %v178
    %v831 = vunpack.c.l.b16 %v179
    %v832 = vunpack.c.h.b16 %v179
    %v833 = vunpack.c.l.b16 %v180
    %v834 = vunpack.c.h.b16 %v180
    %v835 = vunpack.c.l.b16 %v181
    %v836 = vunpack.c.h.b16 %v181
    %v837 = vunpack.c.l.b16 %v182
    %v838 = vunpack.c.h.b16 %v182
    %v839 = vunpack.c.l.b16 %v183
    %v840 = vunpack.c.h.b16 %v183
    %v841 = vunpack.c.l.b16 %v184
    %v842 = vunpack.c.h.b16 %v184
    %v843 = vunpack.c.l.b16 %v185
    %v844 = vunpack.c.h.b16 %v185
    %v845 = vunpack.c.l.b16 %v186
    %v846 = vunpack.c.h.b16 %v186
    %v847 = vunpack.c.l.b16 %v187
    %v848 = vunpack.c.h.b16 %v187
    %v849 = vunpack.c.l.b16 %v188
    %v850 = vunpack.c.h.b16 %v188
    %v851 = vunpack.c.l.b16 %v189
    %v852 = vunpack.c.h.b16 %v189
    %v853 = vunpack.c.l.b16 %v190
    %v854 = vunpack.c.h.b16 %v190
    %v855 = vunpack.c.l.b16 %v191
    %v856 = vunpack.c.h.b16 %v191
    %v857 = vunpack.c.l.b16 %v192
    %v858 = vunpack.c.h.b16 %v192
    %v859 = vunpack.c.l.b16 %v193
    %v860 = vunpack.c.h.b16 %v193
    %v861 = vunpack.c.l.b16 %v194
    %v862 = vunpack.c.h.b16 %v194
    %v863 = vunpack.c.l.b16 %v195
    %v864 = vunpack.c.h.b16 %v195
    %v865 = vunpack.c.l.b16 %v196
    %v866 = vunpack.c.h.b16 %v196
    %v867 = vunpack.c.l.b16 %v197
    %v868 = vunpack.c.h.b16 %v197
    %v869 = vunpack.c.l.b16 %v198
    %v870 = vunpack.c.h.b16 %v198
    %v871 = vunpack.c.l.b16 %v199
    %v872 = vunpack.c.h.b16 %v199
    %v873 = vunpack.c.l.b16 %v200
    %v874 = vunpack.c.h.b16 %v200
    %v875 = vunpack.c.l.b16 %v201
    %v876 = vunpack.c.h.b16 %v201
    %v877 = vunpack.c.l.b16 %v202
    %v878 = vunpack.c.h.b16 %v202
    %v879 = vunpack.c.l.b16 %v203
    %v880 = vunpack.c.h.b16 %v203
    %v881 = vunpack.c.l.b16 %v204
    %v882 = vunpack.c.h.b16 %v204
    %v883 = vunpack.c.l.b16 %v205
    %v884 = vunpack.c.h.b16 %v205
    %v885 = vunpack.c.l.b16 %v206
    %v886 = vunpack.c.h.b16 %v206
    %v887 = vunpack.c.l.b16 %v207
    %v888 = vunpack.c.h.b16 %v207
    %v889 = vunpack.c.l.b16 %v208
    %v890 = vunpack.c.h.b16 %v208
    %v891 = vunpack.c.l.b16 %v209
    %v892 = vunpack.c.h.b16 %v209
    %v893 = vunpack.c.l.b16 %v210
    %v894 = vunpack.c.h.b16 %v210
    %v895 = vunpack.c.l.b16 %v211
    %v896 = vunpack.c.h.b16 %v211
    %v897 = vunpack.c.l.b16 %v212
    %v898 = vunpack.c.h.b16 %v212
    %v899 = vunpack.c.l.b16 %v213
    %v900 = vunpack.c.h.b16 %v213
    %v901 = vunpack.c.l.b16 %v214
    %v902 = vunpack.c.h.b16 %v214
    %v903 = vunpack.c.l.b16 %v215
    %v904 = vunpack.c.h.b16 %v215
    %v905 = vunpack.c.l.b16 %v216
    %v906 = vunpack.c.h.b16 %v216
    %v907 = vunpack.c.l.b16 %v217
    %v908 = vunpack.c.h.b16 %v217
    %v909 = vunpack.c.l.b16 %v218
    %v910 = vunpack.c.h.b16 %v218
    %v911 = vunpack.c.l.b16 %v219
    %v912 = vunpack.c.h.b16 %v219
    %v913 = vunpack.c.l.b16 %v220
    %v914 = vunpack.c.h.b16 %v220
    %v915 = vunpack.c.l.b16 %v221
    %v916 = vunpack.c.h.b16 %v221
    %v917 = vunpack.c.l.b16 %v222
    %v918 = vunpack.c.h.b16 %v222
    %v919 = vunpack.c.l.b16 %v223
    %v920 = vunpack.c.h.b16 %v223
    %v921 = vunpack.c.l.b16 %v224
    %v922 = vunpack.c.h.b16 %v224
    %v923 = vunpack.c.l.b16 %v225
    %v924 = vunpack.c.h.b16 %v225
    %v925 = vunpack.c.l.b16 %v226
    %v926 = vunpack.c.h.b16 %v226
    %v927 = vunpack.c.l.b16 %v227
    %v928 = vunpack.c.h.b16 %v227
    %v929 = vunpack.c.l.b16 %v228
    %v930 = vunpack.c.h.b16 %v228
    %v931 = vunpack.c.l.b16 %v229
    %v932 = vunpack.c.h.b16 %v229
    %v933 = vunpack.c.l.b16 %v230
    %v934 = vunpack.c.h.b16 %v230
    %v935 = vunpack.c.l.b16 %v231
    %v936 = vunpack.c.h.b16 %v231
    %v937 = vunpack.c.l.b16 %v232
    %v938 = vunpack.c.h.b16 %v232
    %v939 = vunpack.c.l.b16 %v233
    %v940 = vunpack.c.h.b16 %v233
    %v941 = vunpack.c.l.b16 %v234
    %v942 = vunpack.c.h.b16 %v234
    %v943 = vunpack.c.l.b16 %v235
    %v944 = vunpack.c.h.b16 %v235
    %v945 = vunpack.c.l.b16 %v236
    %v946 = vunpack.c.h.b16 %v236
    %v947 = vunpack.c.l.b16 %v237
    %v948 = vunpack.c.h.b16 %v237
    %v949 = vunpack.c.l.b16 %v238
    %v950 = vunpack.c.h.b16 %v238
    %v951 = vunpack.c.l.b16 %v239
    %v952 = vunpack.c.h.b16 %v239
    %v953 = vunpack.c.l.b16 %v240
    %v954 = vunpack.c.h.b16 %v240
    %v955 = vunpack.c.l.b16 %v241
    %v956 = vunpack.c.h.b16 %v241
    %v957 = vunpack.c.l.b16 %v242
    %v958 = vunpack.c.h.b16 %v242
    %v959 = vunpack.c.l.b16 %v243
    %v960 = vunpack.c.h.b16 %v243
    %v961 = vunpack.c.l.b16 %v244
    %v962 = vunpack.c.h.b16 %v244
    %v963 = vunpack.c.l.b16 %v245
    %v964 = vunpack.c.h.b16 %v245
    %v965 = vunpack.c.l.b16 %v246
    %v966 = vunpack.c.h.b16 %v246
    %v967 = vunpack.c.l.b16 %v247
    %v968 = vunpack.c.h.b16 %v247
    %v969 = vunpack.c.l.b16 %v248
    %v970 = vunpack.c.h.b16 %v248
    %v971 = vunpack.c.l.b16 %v249
    %v972 = vunpack.c.h.b16 %v249
    %v973 = vunpack.c.l.b16 %v250
    %v974 = vunpack.c.h.b16 %v250
    %v975 = vunpack.c.l.b16 %v251
    %v976 = vunpack.c.h.b16 %v251
    %v977 = vunpack.c.l.b16 %v252
    %v978 = vunpack.c.h.b16 %v252
    %v979 = vunpack.c.l.b16 %v253
    %v980 = vunpack.c.h.b16 %v253
    %v981 = vunpack.c.l.b16 %v254
    %v982 = vunpack.c.h.b16 %v254
    %v983 = vunpack.c.l.b16 %v255
    %v984 = vunpack.c.h.b16 %v255
    %v985 = vunpack.c.l.b16 %v256
    %v986 = vunpack.c.h.b16 %v256
    %v987 = vunpack.c.l.b16 %v257
    %v988 = vunpack.c.h.b16 %v257
    %v989 = vunpack.c.l.b16 %v258
    %v990 = vunpack.c.h.b16 %v258
    %v991 = vunpack.c.l.b16 %v259
    %v992 = vunpack.c.h.b16 %v259
    %v993 = vunpack.c.l.b16 %v260
    %v994 = vunpack.c.h.b16 %v260
    %v995 = vunpack.c.l.b16 %v261
    %v996 = vunpack.c.h.b16 %v261
    %v997 = vunpack.c.l.b16 %v262
    %v998 = vunpack.c.h.b16 %v262
    %v999 = vunpack.c.l.b16 %v263
    %v1000 = vunpack.c.h.b16 %v263
    %v1001 = vunpack.c.l.b16 %v264
    %v1002 = vunpack.c.h.b16 %v264
    %v1003 = vunpack.c.l.b16 %v265
    %v1004 = vunpack.c.h.b16 %v265
    %v1005 = vunpack.c.l.b16 %v266
    %v1006 = vunpack.c.h.b16 %v266
    %v1007 = vunpack.c.l.b16 %v267
    %v1008 = vunpack.c.h.b16 %v267
    %v1009 = vunpack.c.l.b16 %v268
    %v1010 = vunpack.c.h.b16 %v268
    %v1011 = vunpack.c.l.b16 %v269
    %v1012 = vunpack.c.h.b16 %v269
    %v1013 = vunpack.c.l.b16 %v270
    %v1014 = vunpack.c.h.b16 %v270
    %v1015 = vunpack.c.l.b16 %v271
    %v1016 = vunpack.c.h.b16 %v271
    %v1017 = vunpack.c.l.b16 %v272
    %v1018 = vunpack.c.h.b16 %v272
    %v1019 = vunpack.c.l.b16 %v273
    %v1020 = vunpack.c.h.b16 %v273
    %v1021 = vunpack.c.l.b16 %v274
    %v1022 = vunpack.c.h.b16 %v274
    %v1023 = vunpack.c.l.b16 %v275
    %v1024 = vunpack.c.h.b16 %v275
    %v1025 = vunpack.c.l.b16 %v276
    %v1026 = vunpack.c.h.b16 %v276
    %v1027 = vunpack.c.l.b16 %v277
    %v1028 = vunpack.c.h.b16 %v277
    %v1029 = vunpack.c.l.b16 %v278
    %v1030 = vunpack.c.h.b16 %v278
    %v1031 = vunpack.c.l.b16 %v279
    %v1032 = vunpack.c.h.b16 %v279
    %v1033 = vunpack.c.l.b16 %v280
    %v1034 = vunpack.c.h.b16 %v280
    %v1035 = vunpack.c.l.b16 %v281
    %v1036 = vunpack.c.h.b16 %v281
    %v1037 = vunpack.c.l.b16 %v282
    %v1038 = vunpack.c.h.b16 %v282
    %v1039 = vunpack.c.l.b16 %v283
    %v1040 = vunpack.c.h.b16 %v283
    %v1041 = vunpack.c.l.b16 %v284
    %v1042 = vunpack.c.h.b16 %v284
    %v1043 = vunpack.c.l.b16 %v285
    %v1044 = vunpack.c.h.b16 %v285
    %v1045 = vunpack.c.l.b16 %v286
    %v1046 = vunpack.c.h.b16 %v286
    %v1047 = vunpack.c.l.b16 %v287
    %v1048 = vunpack.c.h.b16 %v287
    %v1049 = vunpack.c.l.b16 %v288
    %v1050 = vunpack.c.h.b16 %v288
    %v1051 = vunpack.c.l.b16 %v289
    %v1052 = vunpack.c.h.b16 %v289
    %v1053 = vunpack.c.l.b16 %v290
    %v1054 = vunpack.c.h.b16 %v290
    %v1055 = vunpack.c.l.b16 %v291
    %v1056 = vunpack.c.h.b16 %v291
    %v1057 = vunpack.c.l.b16 %v292
    %v1058 = vunpack.c.h.b16 %v292
    %v1059 = vunpack.c.l.b16 %v293
    %v1060 = vunpack.c.h.b16 %v293
    %v1061 = vunpack.c.l.b16 %v294
    %v1062 = vunpack.c.h.b16 %v294
    %v1063 = vunpack.c.l.b16 %v295
    %v1064 = vunpack.c.h.b16 %v295
    %v1065 = vunpack.c.l.b16 %v296
    %v1066 = vunpack.c.h.b16 %v296
    %v1067 = vunpack.c.l.b16 %v297
    %v1068 = vunpack.c.h.b16 %v297
    %v1069 = vunpack.c.l.b16 %v298
    %v1070 = vunpack.c.h.b16 %v298
    %v1071 = vunpack.c.l.b16 %v299
    %v1072 = vunpack.c.h.b16 %v299
    %v1073 = vunpack.c.l.b16 %v300
    %v1074 = vunpack.c.h.b16 %v300
    %v1075 = vunpack.c.l.b16 %v301
    %v1076 = vunpack.c.h.b16 %v301
    %v1077 = vunpack.c.l.b16 %v302
    %v1078 = vunpack.c.h.b16 %v302
    %v1079 = vunpack.c.l.b16 %v303
    %v1080 = vunpack.c.h.b16 %v303
    %v1081 = vunpack.c.l.b16 %v304
    %v1082 = vunpack.c.h.b16 %v304
    %v1083 = vunpack.c.l.b16 %v305
    %v1084 = vunpack.c.h.b16 %v305
    %v1085 = vunpack.c.l.b16 %v306
    %v1086 = vunpack.c.h.b16 %v306
    %v1087 = vunpack.c.l.b16 %v307
    %v1088 = vunpack.c.h.b16 %v307
    %v1089 = vunpack.c.l.b16 %v308
    %v1090 = vunpack.c.h.b16 %v308
    %v1091 = vunpack.c.l.b16 %v309
    %v1092 = vunpack.c.h.b16 %v309
    %v1093 = vunpack.c.l.b16 %v310
    %v1094 = vunpack.c.h.b16 %v310
    %v1095 = vunpack.c.l.b16 %v311
    %v1096 = vunpack.c.h.b16 %v311
    %v1097 = vunpack.c.l.b16 %v312
    %v1098 = vunpack.c.h.b16 %v312
    %v1099 = vunpack.c.l.b16 %v313
    %v1100 = vunpack.c.h.b16 %v313
    %v1101 = vunpack.c.l.b16 %v314
    %v1102 = vunpack.c.h.b16 %v314
    %v1103 = vunpack.c.l.b16 %v315
    %v1104 = vunpack.c.h.b16 %v315
    %v1105 = vunpack.c.l.b16 %v316
    %v1106 = vunpack.c.h.b16 %v316
    %v1107 = vunpack.c.l.b16 %v317
    %v1108 = vunpack.c.h.b16 %v317
    %v1109 = vunpack.c.l.b16 %v318
    %v1110 = vunpack.c.h.b16 %v318
    %v1111 = vunpack.c.l.b16 %v319
    %v1112 = vunpack.c.h.b16 %v319
    %v1113 = vunpack.c.l.b16 %v320
    %v1114 = vunpack.c.h.b16 %v320
    %v1115 = vunpack.c.l.b16 %v321
    %v1116 = vunpack.c.h.b16 %v321
    %v1117 = vunpack.c.l.b16 %v322
    %v1118 = vunpack.c.h.b16 %v322
    %v1119 = vunpack.c.l.b16 %v323
    %v1120 = vunpack.c.h.b16 %v323
    %v1121 = vunpack.c.l.b16 %v324
    %v1122 = vunpack.c.h.b16 %v324
    %v1123 = vunpack.c.l.b16 %v325
    %v1124 = vunpack.c.h.b16 %v325
    %v1125 = vunpack.c.l.b16 %v326
    %v1126 = vunpack.c.h.b16 %v326
    %v1127 = vunpack.c.l.b16 %v327
    %v1128 = vunpack.c.h.b16 %v327
    %v1129 = vunpack.c.l.b16 %v328
    %v1130 = vunpack.c.h.b16 %v328
    %v1131 = vunpack.c.l.b16 %v329
    %v1132 = vunpack.c.h.b16 %v329
    %v1133 = vunpack.c.l.b16 %v330
    %v1134 = vunpack.c.h.b16 %v330
    %v1135 = vunpack.c.l.b16 %v331
    %v1136 = vunpack.c.h.b16 %v331
    %v1137 = vunpack.c.l.b16 %v332
    %v1138 = vunpack.c.h.b16 %v332
    %v1139 = vpack.c.b16 %v631, %v627
    %v1140 = vpack.c.b16 %v632, %v628
    %v1141 = vpack.c.b16 %v633, %v629
    %v1142 = vpack.c.b16 %v634, %v630
    %v1143 = vpack.c.b16 %v639, %v635
    %v1144 = vpack.c.b16 %v640, %v636
    %v1145 = vpack.c.b16 %v641, %v637
    %v1146 = vpack.c.b16 %v642, %v638
    %v1147 = vpack.c.b16 %v647, %v643
    %v1148 = vpack.c.b16 %v648, %v644
    %v1149 = vpack.c.b16 %v649, %v645
    %v1150 = vpack.c.b16 %v650, %v646
    %v1151 = vpack.c.b16 %v655, %v651
    %v1152 = vpack.c.b16 %v656, %v652
    %v1153 = vpack.c.b16 %v657, %v653
    %v1154 = vpack.c.b16 %v658, %v654
    %v1155 = vpack.c.b16 %v663, %v659
    %v1156 = vpack.c.b16 %v664, %v660
    %v1157 = vpack.c.b16 %v665, %v661
    %v1158 = vpack.c.b16 %v666, %v662
    %v1159 = vpack.c.b16 %v671, %v667
    %v1160 = vpack.c.b16 %v672, %v668
    %v1161 = vpack.c.b16 %v673, %v669
    %v1162 = vpack.c.b16 %v674, %v670
    %v1163 = vpack.c.b16 %v679, %v675
    %v1164 = vpack.c.b16 %v680, %v676
    %v1165 = vpack.c.b16 %v681, %v677
    %v1166 = vpack.c.b16 %v682, %v678
    %v1167 = vpack.c.b16 %v687, %v683
    %v1168 = vpack.c.b16 %v688, %v684
    %v1169 = vpack.c.b16 %v689, %v685
    %v1170 = vpack.c.b16 %v690, %v686
    %v1171 = vpack.c.b16 %v695, %v691
    %v1172 = vpack.c.b16 %v696, %v692
    %v1173 = vpack.c.b16 %v697, %v693
    %v1174 = vpack.c.b16 %v698, %v694
    %v1175 = vpack.c.b16 %v703, %v699
    %v1176 = vpack.c.b16 %v704, %v700
    %v1177 = vpack.c.b16 %v705, %v701
    %v1178 = vpack.c.b16 %v706, %v702
    %v1179 = vpack.c.b16 %v711, %v707
    %v1180 = vpack.c.b16 %v712, %v708
    %v1181 = vpack.c.b16 %v713, %v709
    %v1182 = vpack.c.b16 %v714, %v710
    %v1183 = vpack.c.b16 %v719, %v715
    %v1184 = vpack.c.b16 %v720, %v716
    %v1185 = vpack.c.b16 %v721, %v717
    %v1186 = vpack.c.b16 %v722, %v718
    %v1187 = vpack.c.b16 %v727, %v723
    %v1188 = vpack.c.b16 %v728, %v724
    %v1189 = vpack.c.b16 %v729, %v725
    %v1190 = vpack.c.b16 %v730, %v726
    %v1191 = vpack.c.b16 %v735, %v731
    %v1192 = vpack.c.b16 %v736, %v732
    %v1193 = vpack.c.b16 %v737, %v733
    %v1194 = vpack.c.b16 %v738, %v734
    %v1195 = vpack.c.b16 %v743, %v739
    %v1196 = vpack.c.b16 %v744, %v740
    %v1197 = vpack.c.b16 %v745, %v741
    %v1198 = vpack.c.b16 %v746, %v742
    %v1199 = vpack.c.b16 %v751, %v747
    %v1200 = vpack.c.b16 %v752, %v748
    %v1201 = vpack.c.b16 %v753, %v749
    %v1202 = vpack.c.b16 %v754, %v750
    %v1203 = vpack.c.b16 %v759, %v755
    %v1204 = vpack.c.b16 %v760, %v756
    %v1205 = vpack.c.b16 %v761, %v757
    %v1206 = vpack.c.b16 %v762, %v758
    %v1207 = vpack.c.b16 %v767, %v763
    %v1208 = vpack.c.b16 %v768, %v764
    %v1209 = vpack.c.b16 %v769, %v765
    %v1210 = vpack.c.b16 %v770, %v766
    %v1211 = vpack.c.b16 %v775, %v771
    %v1212 = vpack.c.b16 %v776, %v772
    %v1213 = vpack.c.b16 %v777, %v773
    %v1214 = vpack.c.b16 %v778, %v774
    %v1215 = vpack.c.b16 %v783, %v779
    %v1216 = vpack.c.b16 %v784, %v780
    %v1217 = vpack.c.b16 %v785, %v781
    %v1218 = vpack.c.b16 %v786, %v782
    %v1219 = vpack.c.b16 %v791, %v787
    %v1220 = vpack.c.b16 %v792, %v788
    %v1221 = vpack.c.b16 %v793, %v789
    %v1222 = vpack.c.b16 %v794, %v790
    %v1223 = vpack.c.b16 %v799, %v795
    %v1224 = vpack.c.b16 %v800, %v796
    %v1225 = vpack.c.b16 %v801, %v797
    %v1226 = vpack.c.b16 %v802, %v798
    %v1227 = vpack.c.b16 %v807, %v803
    %v1228 = vpack.c.b16 %v808, %v804
    %v1229 = vpack.c.b16 %v809, %v805
    %v1230 = vpack.c.b16 %v810, %v806
    %v1231 = vpack.c.b16 %v815, %v811
    %v1232 = vpack.c.b16 %v816, %v812
    %v1233 = vpack.c.b16 %v817, %v813
    %v1234 = vpack.c.b16 %v818, %v814
    %v1235 = vpack.c.b16 %v823, %v819
    %v1236 = vpack.c.b16 %v824, %v820
    %v1237 = vpack.c.b16 %v825, %v821
    %v1238 = vpack.c.b16 %v826, %v822
    %v1239 = vpack.c.b16 %v831, %v827
    %v1240 = vpack.c.b16 %v832, %v828
    %v1241 = vpack.c.b16 %v833, %v829
    %v1242 = vpack.c.b16 %v834, %v830
    %v1243 = vpack.c.b16 %v839, %v835
    %v1244 = vpack.c.b16 %v840, %v836
    %v1245 = vpack.c.b16 %v841, %v837
    %v1246 = vpack.c.b16 %v842, %v838
    %v1247 = vpack.c.b16 %v847, %v843
    %v1248 = vpack.c.b16 %v848, %v844
    %v1249 = vpack.c.b16 %v849, %v845
    %v1250 = vpack.c.b16 %v850, %v846
    %v1251 = vpack.c.b16 %v855, %v851
    %v1252 = vpack.c.b16 %v856, %v852
    %v1253 = vpack.c.b16 %v857, %v853
    %v1254 = vpack.c.b16 %v858, %v854
    %v1255 = vpack.c.b16 %v863, %v859
    %v1256 = vpack.c.b16 %v864, %v860
    %v1257 = vpack.c.b16 %v865, %v861
    %v1258 = vpack.c.b16 %v866, %v862
    %v1259 = vpack.c.b16 %v871, %v867
    %v1260 = vpack.c.b16 %v872, %v868
    %v1261 = vpack.c.b16 %v873, %v869
    %v1262 = vpack.c.b16 %v874, %v870
    %v1263 = vpack.c.b16 %v879, %v875
    %v1264 = vpack.c.b16 %v880, %v876
    %v1265 = vpack.c.b16 %v881, %v877
    %v1266 = vpack.c.b16 %v882, %v878
    %v1267 = vpack.c.b16 %v887, %v883
    %v1268 = vpack.c.b16 %v888, %v884
    %v1269 = vpack.c.b16 %v889, %v885
    %v1270 = vpack.c.b16 %v890, %v886
    %v1271 = vpack.c.b16 %v895, %v891
    %v1272 = vpack.c.b16 %v896, %v892
    %v1273 = vpack.c.b16 %v897, %v893
    %v1274 = vpack.c.b16 %v898, %v894
    %v1275 = vpack.c.b16 %v903, %v899
    %v1276 = vpack.c.b16 %v904, %v900
    %v1277 = vpack.c.b16 %v905, %v901
    %v1278 = vpack.c.b16 %v906, %v902
    %v1279 = vpack.c.b16 %v911, %v907
    %v1280 = vpack.c.b16 %v912, %v908
    %v1281 = vpack.c.b16 %v913, %v909
    %v1282 = vpack.c.b16 %v914, %v910
    %v1283 = vpack.c.b16 %v919, %v915
    %v1284 = vpack.c.b16 %v920, %v916
    %v1285 = vpack.c.b16 %v921, %v917
    %v1286 = vpack.c.b16 %v922, %v918
    %v1287 = vpack.c.b16 %v927, %v923
    %v1288 = vpack.c.b16 %v928, %v924
    %v1289 = vpack.c.b16 %v929, %v925
    %v1290 = vpack.c.b16 %v930, %v926
    %v1291 = vpack.c.b16 %v935, %v931
    %v1292 = vpack.c.b16 %v936, %v932
    %v1293 = vpack.c.b16 %v937, %v933
    %v1294 = vpack.c.b16 %v938, %v934
    %v1295 = vpack.c.b16 %v943, %v939
    %v1296 = vpack.c.b16 %v944, %v940
    %v1297 = vpack.c.b16 %v945, %v941
    %v1298 = vpack.c.b16 %v946, %v942
    %v1299 = vpack.c.b16 %v951, %v947
    %v1300 = vpack.c.b16 %v952, %v948
    %v1301 = vpack.c.b16 %v953, %v949
    %v1302 = vpack.c.b16 %v954, %v950
    %v1303 = vpack.c.b16 %v959, %v955
    %v1304 = vpack.c.b16 %v960, %v956
    %v1305 = vpack.c.b16 %v961, %v957
    %v1306 = vpack.c.b16 %v962, %v958
    %v1307 = vpack.c.b16 %v967, %v963
    %v1308 = vpack.c.b16 %v968, %v964
    %v1309 = vpack.c.b16 %v969, %v965
    %v1310 = vpack.c.b16 %v970, %v966
    %v1311 = vpack.c.b16 %v975, %v971
    %v1312 = vpack.c.b16 %v976, %v972
    %v1313 = vpack.c.b16 %v977, %v973
    %v1314 = vpack.c.b16 %v978, %v974
    %v1315 = vpack.c.b16 %v983, %v979
    %v1316 = vpack.c.b16 %v984, %v980
    %v1317 = vpack.c.b16 %v985, %v981
    %v1318 = vpack.c.b16 %v986, %v982
    %v1319 = vpack.c.b16 %v991, %v987
    %v1320 = vpack.c.b16 %v992, %v988
    %v1321 = vpack.c.b16 %v993, %v989
    %v1322 = vpack.c.b16 %v994, %v990
    %v1323 = vpack.c.b16 %v999, %v995
    %v1324 = vpack.c.b16 %v1000, %v996
    %v1325 = vpack.c.b16 %v1001, %v997
    %v1326 = vpack.c.b16 %v1002, %v998
    %v1327 = vpack.c.b16 %v1007, %v1003
    %v1328 = vpack.c.b16 %v1008, %v1004
    %v1329 = vpack.c.b16 %v1009, %v1005
    %v1330 = vpack.c.b16 %v1010, %v1006
    %v1331 = vpack.c.b16 %v1015, %v1011
    %v1332 = vpack.c.b16 %v1016, %v1012
    %v1333 = vpack.c.b16 %v1017, %v1013
    %v1334 = vpack.c.b16 %v1018, %v1014
    %v1335 = vpack.c.b16 %v1023, %v1019
    %v1336 = vpack.c.b16 %v1024, %v1020
    %v1337 = vpack.c.b16 %v1025, %v1021
    %v1338 = vpack.c.b16 %v1026, %v1022
    %v1339 = vpack.c.b16 %v1031, %v1027
    %v1340 = vpack.c.b16 %v1032, %v1028
    %v1341 = vpack.c.b16 %v1033, %v1029
    %v1342 = vpack.c.b16 %v1034, %v1030
    %v1343 = vpack.c.b16 %v1039, %v1035
    %v1344 = vpack.c.b16 %v1040, %v1036
    %v1345 = vpack.c.b16 %v1041, %v1037
    %v1346 = vpack.c.b16 %v1042, %v1038
    %v1347 = vpack.c.b16 %v1047, %v1043
    %v1348 = vpack.c.b16 %v1048, %v1044
    %v1349 = vpack.c.b16 %v1049, %v1045
    %v1350 = vpack.c.b16 %v1050, %v1046
    %v1351 = vpack.c.b16 %v1055, %v1051
    %v1352 = vpack.c.b16 %v1056, %v1052
    %v1353 = vpack.c.b16 %v1057, %v1053
    %v1354 = vpack.c.b16 %v1058, %v1054
    %v1355 = vpack.c.b16 %v1063, %v1059
    %v1356 = vpack.c.b16 %v1064, %v1060
    %v1357 = vpack.c.b16 %v1065, %v1061
    %v1358 = vpack.c.b16 %v1066, %v1062
    %v1359 = vpack.c.b16 %v1071, %v1067
    %v1360 = vpack.c.b16 %v1072, %v1068
    %v1361 = vpack.c.b16 %v1073, %v1069
    %v1362 = vpack.c.b16 %v1074, %v1070
    %v1363 = vpack.c.b16 %v1079, %v1075
    %v1364 = vpack.c.b16 %v1080, %v1076
    %v1365 = vpack.c.b16 %v1081, %v1077
    %v1366 = vpack.c.b16 %v1082, %v1078
    %v1367 = vpack.c.b16 %v1087, %v1083
    %v1368 = vpack.c.b16 %v1088, %v1084
    %v1369 = vpack.c.b16 %v1089, %v1085
    %v1370 = vpack.c.b16 %v1090, %v1086
    %v1371 = vpack.c.b16 %v1095, %v1091
    %v1372 = vpack.c.b16 %v1096, %v1092
    %v1373 = vpack.c.b16 %v1097, %v1093
    %v1374 = vpack.c.b16 %v1098, %v1094
    %v1375 = vpack.c.b16 %v1103, %v1099
    %v1376 = vpack.c.b16 %v1104, %v1100
    %v1377 = vpack.c.b16 %v1105, %v1101
    %v1378 = vpack.c.b16 %v1106, %v1102
    %v1379 = vpack.c.b16 %v1111, %v1107
    %v1380 = vpack.c.b16 %v1112, %v1108
    %v1381 = vpack.c.b16 %v1113, %v1109
    %v1382 = vpack.c.b16 %v1114, %v1110
    %v1383 = vpack.c.b16 %v1119, %v1115
    %v1384 = vpack.c.b16 %v1120, %v1116
    %v1385 = vpack.c.b16 %v1121, %v1117
    %v1386 = vpack.c.b16 %v1122, %v1118
    %v1387 = vpack.c.b16 %v1127, %v1123
    %v1388 = vpack.c.b16 %v1128, %v1124
    %v1389 = vpack.c.b16 %v1129, %v1125
    %v1390 = vpack.c.b16 %v1130, %v1126
    %v1391 = vpack.c.b16 %v1135, %v1131
    %v1392 = vpack.c.b16 %v1136, %v1132
    %v1393 = vpack.c.b16 %v1137, %v1133
    %v1394 = vpack.c.b16 %v1138, %v1134
    %1651 = vmatpush.bf16.msra.mxu0 %v1167
    %1652 = vmatpush.bf16.msra.mxu0 %v1163
    %1653 = vmatpush.bf16.msra.mxu0 %v1159
    %1654 = vmatpush.bf16.msra.mxu0 %v1155
    %1655 = vmatpush.bf16.msra.mxu0 %v1151
    %1656 = vmatpush.bf16.msra.mxu0 %v1147
    %1657 = vmatpush.bf16.msra.mxu0 %v1143
    %1658 = vmatpush.bf16.msra.mxu0 %v1139
    %1659 = vmatmul.bf16.gmra.mxu0 %v355
    %v1660 = vpop.f32.mrf.mxu0
    %v1661 = vadd.f32 %v335, %v1660
    %v1662 = vpop.f32.mrf.mxu0
    %1663 = vdwg.mxu0
    %1664 = vmatpush.bf16.msra.mxu0 %v1199
    %1665 = vmatpush.bf16.msra.mxu0 %v1195
    %1666 = vmatpush.bf16.msra.mxu0 %v1191
    %1667 = vmatpush.bf16.msra.mxu0 %v1187
    %1668 = vmatpush.bf16.msra.mxu0 %v1183
    %1669 = vmatpush.bf16.msra.mxu0 %v1179
    %1670 = vmatpush.bf16.msra.mxu0 %v1175
    %1671 = vmatpush.bf16.msra.mxu0 %v1171
    %1672 = vmatmul.bf16.gmra.mxu0 %v356
    %v1673 = vpop.f32.mrf.mxu0
    %v1674 = vadd.f32 %v1661, %v1673
    %v1675 = vpop.f32.mrf.mxu0
    %1676 = vdwg.mxu0
    %1677 = vmatpush.bf16.msra.mxu0 %v1231
    %1678 = vmatpush.bf16.msra.mxu0 %v1227
    %1679 = vmatpush.bf16.msra.mxu0 %v1223
    %1680 = vmatpush.bf16.msra.mxu0 %v1219
    %1681 = vmatpush.bf16.msra.mxu0 %v1215
    %1682 = vmatpush.bf16.msra.mxu0 %v1211
    %1683 = vmatpush.bf16.msra.mxu0 %v1207
    %1684 = vmatpush.bf16.msra.mxu0 %v1203
    %1685 = vmatmul.bf16.gmra.mxu0 %v357
    %v1686 = vpop.f32.mrf.mxu0
    %v1687 = vadd.f32 %v1674, %v1686
    %v1688 = vpop.f32.mrf.mxu0
    %1689 = vdwg.mxu0
    %1690 = vmatpush.bf16.msra.mxu0 %v1263
    %1691 = vmatpush.bf16.msra.mxu0 %v1259
    %1692 = vmatpush.bf16.msra.mxu0 %v1255
    %1693 = vmatpush.bf16.msra.mxu0 %v1251
    %1694 = vmatpush.bf16.msra.mxu0 %v1247
    %1695 = vmatpush.bf16.msra.mxu0 %v1243
    %1696 = vmatpush.bf16.msra.mxu0 %v1239
    %1697 = vmatpush.bf16.msra.mxu0 %v1235
    %1698 = vmatmul.bf16.gmra.mxu0 %v358
    %v1699 = vpop.f32.mrf.mxu0
    %v1700 = vadd.f32 %v1687, %v1699
    %v1701 = vpop.f32.mrf.mxu0
    %1702 = vdwg.mxu0
    %1703 = vmatpush.bf16.msra.mxu0 %v1295
    %1704 = vmatpush.bf16.msra.mxu0 %v1291
    %1705 = vmatpush.bf16.msra.mxu0 %v1287
    %1706 = vmatpush.bf16.msra.mxu0 %v1283
    %1707 = vmatpush.bf16.msra.mxu0 %v1279
    %1708 = vmatpush.bf16.msra.mxu0 %v1275
    %1709 = vmatpush.bf16.msra.mxu0 %v1271
    %1710 = vmatpush.bf16.msra.mxu0 %v1267
    %1711 = vmatmul.bf16.gmra.mxu0 %v359
    %v1712 = vpop.f32.mrf.mxu0
    %v1713 = vadd.f32 %v1700, %v1712
    %v1714 = vpop.f32.mrf.mxu0
    %1715 = vdwg.mxu0
    %1716 = vmatpush.bf16.msra.mxu0 %v1327
    %1717 = vmatpush.bf16.msra.mxu0 %v1323
    %1718 = vmatpush.bf16.msra.mxu0 %v1319
    %1719 = vmatpush.bf16.msra.mxu0 %v1315
    %1720 = vmatpush.bf16.msra.mxu0 %v1311
    %1721 = vmatpush.bf16.msra.mxu0 %v1307
    %1722 = vmatpush.bf16.msra.mxu0 %v1303
    %1723 = vmatpush.bf16.msra.mxu0 %v1299
    %1724 = vmatmul.bf16.gmra.mxu0 %v360
    %v1725 = vpop.f32.mrf.mxu0
    %v1726 = vadd.f32 %v1713, %v1725
    %v1727 = vpop.f32.mrf.mxu0
    %1728 = vdwg.mxu0
    %1729 = vmatpush.bf16.msra.mxu0 %v1359
    %1730 = vmatpush.bf16.msra.mxu0 %v1355
    %1731 = vmatpush.bf16.msra.mxu0 %v1351
    %1732 = vmatpush.bf16.msra.mxu0 %v1347
    %1733 = vmatpush.bf16.msra.mxu0 %v1343
    %1734 = vmatpush.bf16.msra.mxu0 %v1339
    %1735 = vmatpush.bf16.msra.mxu0 %v1335
    %1736 = vmatpush.bf16.msra.mxu0 %v1331
    %1737 = vmatmul.bf16.gmra.mxu0 %v361
    %v1738 = vpop.f32.mrf.mxu0
    %v1739 = vadd.f32 %v1726, %v1738
    %v1740 = vpop.f32.mrf.mxu0
    %1741 = vdwg.mxu0
    %1742 = vmatpush.bf16.msra.mxu0 %v1391
    %1743 = vmatpush.bf16.msra.mxu0 %v1387
    %1744 = vmatpush.bf16.msra.mxu0 %v1383
    %1745 = vmatpush.bf16.msra.mxu0 %v1379
    %1746 = vmatpush.bf16.msra.mxu0 %v1375
    %1747 = vmatpush.bf16.msra.mxu0 %v1371
    %1748 = vmatpush.bf16.msra.mxu0 %v1367
    %1749 = vmatpush.bf16.msra.mxu0 %v1363
    %1750 = vmatmul.bf16.gmra.mxu0 %v362
    %v1751 = vpop.f32.mrf.mxu0
    %v1752 = vadd.f32 %v1739, %v1751
    %v1753 = vpop.f32.mrf.mxu0
    %1754 = vdwg.mxu0
    %1755 = vmatpush.bf16.msra.mxu0 %v1168
    %1756 = vmatpush.bf16.msra.mxu0 %v1164
    %1757 = vmatpush.bf16.msra.mxu0 %v1160
    %1758 = vmatpush.bf16.msra.mxu0 %v1156
    %1759 = vmatpush.bf16.msra.mxu0 %v1152
    %1760 = vmatpush.bf16.msra.mxu0 %v1148
    %1761 = vmatpush.bf16.msra.mxu0 %v1144
    %1762 = vmatpush.bf16.msra.mxu0 %v1140
    %1763 = vmatmul.bf16.gmra.mxu0 %v355
    %v1764 = vpop.f32.mrf.mxu0
    %v1765 = vadd.f32 %v336, %v1764
    %v1766 = vpop.f32.mrf.mxu0
    %1767 = vdwg.mxu0
    %1768 = vmatpush.bf16.msra.mxu0 %v1200
    %1769 = vmatpush.bf16.msra.mxu0 %v1196
    %1770 = vmatpush.bf16.msra.mxu0 %v1192
    %1771 = vmatpush.bf16.msra.mxu0 %v1188
    %1772 = vmatpush.bf16.msra.mxu0 %v1184
    %1773 = vmatpush.bf16.msra.mxu0 %v1180
    %1774 = vmatpush.bf16.msra.mxu0 %v1176
    %1775 = vmatpush.bf16.msra.mxu0 %v1172
    %1776 = vmatmul.bf16.gmra.mxu0 %v356
    %v1777 = vpop.f32.mrf.mxu0
    %v1778 = vadd.f32 %v1765, %v1777
    %v1779 = vpop.f32.mrf.mxu0
    %1780 = vdwg.mxu0
    %1781 = vmatpush.bf16.msra.mxu0 %v1232
    %1782 = vmatpush.bf16.msra.mxu0 %v1228
    %1783 = vmatpush.bf16.msra.mxu0 %v1224
    %1784 = vmatpush.bf16.msra.mxu0 %v1220
    %1785 = vmatpush.bf16.msra.mxu0 %v1216
    %1786 = vmatpush.bf16.msra.mxu0 %v1212
    %1787 = vmatpush.bf16.msra.mxu0 %v1208
    %1788 = vmatpush.bf16.msra.mxu0 %v1204
    %1789 = vmatmul.bf16.gmra.mxu0 %v357
    %v1790 = vpop.f32.mrf.mxu0
    %v1791 = vadd.f32 %v1778, %v1790
    %v1792 = vpop.f32.mrf.mxu0
    %1793 = vdwg.mxu0
    %1794 = vmatpush.bf16.msra.mxu0 %v1264
    %1795 = vmatpush.bf16.msra.mxu0 %v1260
    %1796 = vmatpush.bf16.msra.mxu0 %v1256
    %1797 = vmatpush.bf16.msra.mxu0 %v1252
    %1798 = vmatpush.bf16.msra.mxu0 %v1248
    %1799 = vmatpush.bf16.msra.mxu0 %v1244
    %1800 = vmatpush.bf16.msra.mxu0 %v1240
    %1801 = vmatpush.bf16.msra.mxu0 %v1236
    %1802 = vmatmul.bf16.gmra.mxu0 %v358
    %v1803 = vpop.f32.mrf.mxu0
    %v1804 = vadd.f32 %v1791, %v1803
    %v1805 = vpop.f32.mrf.mxu0
    %1806 = vdwg.mxu0
    %1807 = vmatpush.bf16.msra.mxu0 %v1296
    %1808 = vmatpush.bf16.msra.mxu0 %v1292
    %1809 = vmatpush.bf16.msra.mxu0 %v1288
    %1810 = vmatpush.bf16.msra.mxu0 %v1284
    %1811 = vmatpush.bf16.msra.mxu0 %v1280
    %1812 = vmatpush.bf16.msra.mxu0 %v1276
    %1813 = vmatpush.bf16.msra.mxu0 %v1272
    %1814 = vmatpush.bf16.msra.mxu0 %v1268
    %1815 = vmatmul.bf16.gmra.mxu0 %v359
    %v1816 = vpop.f32.mrf.mxu0
    %v1817 = vadd.f32 %v1804, %v1816
    %v1818 = vpop.f32.mrf.mxu0
    %1819 = vdwg.mxu0
    %1820 = vmatpush.bf16.msra.mxu0 %v1328
    %1821 = vmatpush.bf16.msra.mxu0 %v1324
    %1822 = vmatpush.bf16.msra.mxu0 %v1320
    %1823 = vmatpush.bf16.msra.mxu0 %v1316
    %1824 = vmatpush.bf16.msra.mxu0 %v1312
    %1825 = vmatpush.bf16.msra.mxu0 %v1308
    %1826 = vmatpush.bf16.msra.mxu0 %v1304
    %1827 = vmatpush.bf16.msra.mxu0 %v1300
    %1828 = vmatmul.bf16.gmra.mxu0 %v360
    %v1829 = vpop.f32.mrf.mxu0
    %v1830 = vadd.f32 %v1817, %v1829
    %v1831 = vpop.f32.mrf.mxu0
    %1832 = vdwg.mxu0
    %1833 = vmatpush.bf16.msra.mxu0 %v1360
    %1834 = vmatpush.bf16.msra.mxu0 %v1356
    %1835 = vmatpush.bf16.msra.mxu0 %v1352
    %1836 = vmatpush.bf16.msra.mxu0 %v1348
    %1837 = vmatpush.bf16.msra.mxu0 %v1344
    %1838 = vmatpush.bf16.msra.mxu0 %v1340
    %1839 = vmatpush.bf16.msra.mxu0 %v1336
    %1840 = vmatpush.bf16.msra.mxu0 %v1332
    %1841 = vmatmul.bf16.gmra.mxu0 %v361
    %v1842 = vpop.f32.mrf.mxu0
    %v1843 = vadd.f32 %v1830, %v1842
    %v1844 = vpop.f32.mrf.mxu0
    %1845 = vdwg.mxu0
    %1846 = vmatpush.bf16.msra.mxu0 %v1392
    %1847 = vmatpush.bf16.msra.mxu0 %v1388
    %1848 = vmatpush.bf16.msra.mxu0 %v1384
    %1849 = vmatpush.bf16.msra.mxu0 %v1380
    %1850 = vmatpush.bf16.msra.mxu0 %v1376
    %1851 = vmatpush.bf16.msra.mxu0 %v1372
    %1852 = vmatpush.bf16.msra.mxu0 %v1368
    %1853 = vmatpush.bf16.msra.mxu0 %v1364
    %1854 = vmatmul.bf16.gmra.mxu0 %v362
    %v1855 = vpop.f32.mrf.mxu0
    %v1856 = vadd.f32 %v1843, %v1855
    %v1857 = vpop.f32.mrf.mxu0
    %1858 = vdwg.mxu0
    %1859 = vmatpush.bf16.msra.mxu0 %v1169
    %1860 = vmatpush.bf16.msra.mxu0 %v1165
    %1861 = vmatpush.bf16.msra.mxu0 %v1161
    %1862 = vmatpush.bf16.msra.mxu0 %v1157
    %1863 = vmatpush.bf16.msra.mxu0 %v1153
    %1864 = vmatpush.bf16.msra.mxu0 %v1149
    %1865 = vmatpush.bf16.msra.mxu0 %v1145
    %1866 = vmatpush.bf16.msra.mxu0 %v1141
    %1867 = vmatmul.bf16.gmra.mxu0 %v355
    %v1868 = vpop.f32.mrf.mxu0
    %v1869 = vadd.f32 %v337, %v1868
    %v1870 = vpop.f32.mrf.mxu0
    %1871 = vdwg.mxu0
    %1872 = vmatpush.bf16.msra.mxu0 %v1201
    %1873 = vmatpush.bf16.msra.mxu0 %v1197
    %1874 = vmatpush.bf16.msra.mxu0 %v1193
    %1875 = vmatpush.bf16.msra.mxu0 %v1189
    %1876 = vmatpush.bf16.msra.mxu0 %v1185
    %1877 = vmatpush.bf16.msra.mxu0 %v1181
    %1878 = vmatpush.bf16.msra.mxu0 %v1177
    %1879 = vmatpush.bf16.msra.mxu0 %v1173
    %1880 = vmatmul.bf16.gmra.mxu0 %v356
    %v1881 = vpop.f32.mrf.mxu0
    %v1882 = vadd.f32 %v1869, %v1881
    %v1883 = vpop.f32.mrf.mxu0
    %1884 = vdwg.mxu0
    %1885 = vmatpush.bf16.msra.mxu0 %v1233
    %1886 = vmatpush.bf16.msra.mxu0 %v1229
    %1887 = vmatpush.bf16.msra.mxu0 %v1225
    %1888 = vmatpush.bf16.msra.mxu0 %v1221
    %1889 = vmatpush.bf16.msra.mxu0 %v1217
    %1890 = vmatpush.bf16.msra.mxu0 %v1213
    %1891 = vmatpush.bf16.msra.mxu0 %v1209
    %1892 = vmatpush.bf16.msra.mxu0 %v1205
    %1893 = vmatmul.bf16.gmra.mxu0 %v357
    %v1894 = vpop.f32.mrf.mxu0
    %v1895 = vadd.f32 %v1882, %v1894
    %v1896 = vpop.f32.mrf.mxu0
    %1897 = vdwg.mxu0
    %1898 = vmatpush.bf16.msra.mxu0 %v1265
    %1899 = vmatpush.bf16.msra.mxu0 %v1261
    %1900 = vmatpush.bf16.msra.mxu0 %v1257
    %1901 = vmatpush.bf16.msra.mxu0 %v1253
    %1902 = vmatpush.bf16.msra.mxu0 %v1249
    %1903 = vmatpush.bf16.msra.mxu0 %v1245
    %1904 = vmatpush.bf16.msra.mxu0 %v1241
    %1905 = vmatpush.bf16.msra.mxu0 %v1237
    %1906 = vmatmul.bf16.gmra.mxu0 %v358
    %v1907 = vpop.f32.mrf.mxu0
    %v1908 = vadd.f32 %v1895, %v1907
    %v1909 = vpop.f32.mrf.mxu0
    %1910 = vdwg.mxu0
    %1911 = vmatpush.bf16.msra.mxu0 %v1297
    %1912 = vmatpush.bf16.msra.mxu0 %v1293
    %1913 = vmatpush.bf16.msra.mxu0 %v1289
    %1914 = vmatpush.bf16.msra.mxu0 %v1285
    %1915 = vmatpush.bf16.msra.mxu0 %v1281
    %1916 = vmatpush.bf16.msra.mxu0 %v1277
    %1917 = vmatpush.bf16.msra.mxu0 %v1273
    %1918 = vmatpush.bf16.msra.mxu0 %v1269
    %1919 = vmatmul.bf16.gmra.mxu0 %v359
    %v1920 = vpop.f32.mrf.mxu0
    %v1921 = vadd.f32 %v1908, %v1920
    %v1922 = vpop.f32.mrf.mxu0
    %1923 = vdwg.mxu0
    %1924 = vmatpush.bf16.msra.mxu0 %v1329
    %1925 = vmatpush.bf16.msra.mxu0 %v1325
    %1926 = vmatpush.bf16.msra.mxu0 %v1321
    %1927 = vmatpush.bf16.msra.mxu0 %v1317
    %1928 = vmatpush.bf16.msra.mxu0 %v1313
    %1929 = vmatpush.bf16.msra.mxu0 %v1309
    %1930 = vmatpush.bf16.msra.mxu0 %v1305
    %1931 = vmatpush.bf16.msra.mxu0 %v1301
    %1932 = vmatmul.bf16.gmra.mxu0 %v360
    %v1933 = vpop.f32.mrf.mxu0
    %v1934 = vadd.f32 %v1921, %v1933
    %v1935 = vpop.f32.mrf.mxu0
    %1936 = vdwg.mxu0
    %1937 = vmatpush.bf16.msra.mxu0 %v1361
    %1938 = vmatpush.bf16.msra.mxu0 %v1357
    %1939 = vmatpush.bf16.msra.mxu0 %v1353
    %1940 = vmatpush.bf16.msra.mxu0 %v1349
    %1941 = vmatpush.bf16.msra.mxu0 %v1345
    %1942 = vmatpush.bf16.msra.mxu0 %v1341
    %1943 = vmatpush.bf16.msra.mxu0 %v1337
    %1944 = vmatpush.bf16.msra.mxu0 %v1333
    %1945 = vmatmul.bf16.gmra.mxu0 %v361
    %v1946 = vpop.f32.mrf.mxu0
    %v1947 = vadd.f32 %v1934, %v1946
    %v1948 = vpop.f32.mrf.mxu0
    %1949 = vdwg.mxu0
    %1950 = vmatpush.bf16.msra.mxu0 %v1393
    %1951 = vmatpush.bf16.msra.mxu0 %v1389
    %1952 = vmatpush.bf16.msra.mxu0 %v1385
    %1953 = vmatpush.bf16.msra.mxu0 %v1381
    %1954 = vmatpush.bf16.msra.mxu0 %v1377
    %1955 = vmatpush.bf16.msra.mxu0 %v1373
    %1956 = vmatpush.bf16.msra.mxu0 %v1369
    %1957 = vmatpush.bf16.msra.mxu0 %v1365
    %1958 = vmatmul.bf16.gmra.mxu0 %v362
    %v1959 = vpop.f32.mrf.mxu0
    %v1960 = vadd.f32 %v1947, %v1959
    %v1961 = vpop.f32.mrf.mxu0
    %1962 = vdwg.mxu0
    %1963 = vmatpush.bf16.msra.mxu0 %v1170
    %1964 = vmatpush.bf16.msra.mxu0 %v1166
    %1965 = vmatpush.bf16.msra.mxu0 %v1162
    %1966 = vmatpush.bf16.msra.mxu0 %v1158
    %1967 = vmatpush.bf16.msra.mxu0 %v1154
    %1968 = vmatpush.bf16.msra.mxu0 %v1150
    %1969 = vmatpush.bf16.msra.mxu0 %v1146
    %1970 = vmatpush.bf16.msra.mxu0 %v1142
    %1971 = vmatmul.bf16.gmra.mxu0 %v355
    %v1972 = vpop.f32.mrf.mxu0
    %v1973 = vadd.f32 %v338, %v1972
    %v1974 = vpop.f32.mrf.mxu0
    %1975 = vdwg.mxu0
    %1976 = vmatpush.bf16.msra.mxu0 %v1202
    %1977 = vmatpush.bf16.msra.mxu0 %v1198
    %1978 = vmatpush.bf16.msra.mxu0 %v1194
    %1979 = vmatpush.bf16.msra.mxu0 %v1190
    %1980 = vmatpush.bf16.msra.mxu0 %v1186
    %1981 = vmatpush.bf16.msra.mxu0 %v1182
    %1982 = vmatpush.bf16.msra.mxu0 %v1178
    %1983 = vmatpush.bf16.msra.mxu0 %v1174
    %1984 = vmatmul.bf16.gmra.mxu0 %v356
    %v1985 = vpop.f32.mrf.mxu0
    %v1986 = vadd.f32 %v1973, %v1985
    %v1987 = vpop.f32.mrf.mxu0
    %1988 = vdwg.mxu0
    %1989 = vmatpush.bf16.msra.mxu0 %v1234
    %1990 = vmatpush.bf16.msra.mxu0 %v1230
    %1991 = vmatpush.bf16.msra.mxu0 %v1226
    %1992 = vmatpush.bf16.msra.mxu0 %v1222
    %1993 = vmatpush.bf16.msra.mxu0 %v1218
    %1994 = vmatpush.bf16.msra.mxu0 %v1214
    %1995 = vmatpush.bf16.msra.mxu0 %v1210
    %1996 = vmatpush.bf16.msra.mxu0 %v1206
    %1997 = vmatmul.bf16.gmra.mxu0 %v357
    %v1998 = vpop.f32.mrf.mxu0
    %v1999 = vadd.f32 %v1986, %v1998
    %v2000 = vpop.f32.mrf.mxu0
    %2001 = vdwg.mxu0
    %2002 = vmatpush.bf16.msra.mxu0 %v1266
    %2003 = vmatpush.bf16.msra.mxu0 %v1262
    %2004 = vmatpush.bf16.msra.mxu0 %v1258
    %2005 = vmatpush.bf16.msra.mxu0 %v1254
    %2006 = vmatpush.bf16.msra.mxu0 %v1250
    %2007 = vmatpush.bf16.msra.mxu0 %v1246
    %2008 = vmatpush.bf16.msra.mxu0 %v1242
    %2009 = vmatpush.bf16.msra.mxu0 %v1238
    %2010 = vmatmul.bf16.gmra.mxu0 %v358
    %v2011 = vpop.f32.mrf.mxu0
    %v2012 = vadd.f32 %v1999, %v2011
    %v2013 = vpop.f32.mrf.mxu0
    %2014 = vdwg.mxu0
    %2015 = vmatpush.bf16.msra.mxu0 %v1298
    %2016 = vmatpush.bf16.msra.mxu0 %v1294
    %2017 = vmatpush.bf16.msra.mxu0 %v1290
    %2018 = vmatpush.bf16.msra.mxu0 %v1286
    %2019 = vmatpush.bf16.msra.mxu0 %v1282
    %2020 = vmatpush.bf16.msra.mxu0 %v1278
    %2021 = vmatpush.bf16.msra.mxu0 %v1274
    %2022 = vmatpush.bf16.msra.mxu0 %v1270
    %2023 = vmatmul.bf16.gmra.mxu0 %v359
    %v2024 = vpop.f32.mrf.mxu0
    %v2025 = vadd.f32 %v2012, %v2024
    %v2026 = vpop.f32.mrf.mxu0
    %2027 = vdwg.mxu0
    %2028 = vmatpush.bf16.msra.mxu0 %v1330
    %2029 = vmatpush.bf16.msra.mxu0 %v1326
    %2030 = vmatpush.bf16.msra.mxu0 %v1322
    %2031 = vmatpush.bf16.msra.mxu0 %v1318
    %2032 = vmatpush.bf16.msra.mxu0 %v1314
    %2033 = vmatpush.bf16.msra.mxu0 %v1310
    %2034 = vmatpush.bf16.msra.mxu0 %v1306
    %2035 = vmatpush.bf16.msra.mxu0 %v1302
    %2036 = vmatmul.bf16.gmra.mxu0 %v360
    %v2037 = vpop.f32.mrf.mxu0
    %v2038 = vadd.f32 %v2025, %v2037
    %v2039 = vpop.f32.mrf.mxu0
    %2040 = vdwg.mxu0
    %2041 = vmatpush.bf16.msra.mxu0 %v1362
    %2042 = vmatpush.bf16.msra.mxu0 %v1358
    %2043 = vmatpush.bf16.msra.mxu0 %v1354
    %2044 = vmatpush.bf16.msra.mxu0 %v1350
    %2045 = vmatpush.bf16.msra.mxu0 %v1346
    %2046 = vmatpush.bf16.msra.mxu0 %v1342
    %2047 = vmatpush.bf16.msra.mxu0 %v1338
    %2048 = vmatpush.bf16.msra.mxu0 %v1334
    %2049 = vmatmul.bf16.gmra.mxu0 %v361
    %v2050 = vpop.f32.mrf.mxu0
    %v2051 = vadd.f32 %v2038, %v2050
    %v2052 = vpop.f32.mrf.mxu0
    %2053 = vdwg.mxu0
    %2054 = vmatpush.bf16.msra.mxu0 %v1394
    %2055 = vmatpush.bf16.msra.mxu0 %v1390
    %2056 = vmatpush.bf16.msra.mxu0 %v1386
    %2057 = vmatpush.bf16.msra.mxu0 %v1382
    %2058 = vmatpush.bf16.msra.mxu0 %v1378
    %2059 = vmatpush.bf16.msra.mxu0 %v1374
    %2060 = vmatpush.bf16.msra.mxu0 %v1370
    %2061 = vmatpush.bf16.msra.mxu0 %v1366
    %2062 = vmatmul.bf16.gmra.mxu0 %v362
    %v2063 = vpop.f32.mrf.mxu0
    %v2064 = vadd.f32 %v2051, %v2063
    %v2065 = vpop.f32.mrf.mxu0
    %2066 = vdwg.mxu0
    %v2067 = vmax.f32 %v1752, 0.0
    %v2068 = vmax.f32 %v1856, 0.0
    %v2069 = vmax.f32 %v1960, 0.0
    %v2070 = vmax.f32 %v2064, 0.0
    %v2071 = vpack.c.bf16 %v2067, %v2067
    %v2072 = vpack.c.bf16 %v2068, %v2068
    %v2073 = vpack.c.bf16 %v2069, %v2069
    %v2074 = vpack.c.bf16 %v2070, %v2070
    %v2075 = vld [vmem:[#allocation4] sm:$0xff]
    %v2076 = vld [vmem:[#allocation4 + $0x8] sm:$0xff]
    %v2077 = vld [vmem:[#allocation4 + $0x10] sm:$0xff]
    %v2078 = vld [vmem:[#allocation4 + $0x18] sm:$0xff]
    %v2079 = vld [vmem:[#allocation4 + $0x20] sm:$0xff]
    %v2080 = vld [vmem:[#allocation4 + $0x28] sm:$0xff]
    %v2081 = vld [vmem:[#allocation4 + $0x30] sm:$0xff]
    %v2082 = vld [vmem:[#allocation4 + $0x38] sm:$0xff]
    %v2083 = vld [vmem:[#allocation4 + $0x40] sm:$0xff]
    %v2084 = vld [vmem:[#allocation4 + $0x48] sm:$0xff]
    %v2085 = vld [vmem:[#allocation4 + $0x50] sm:$0xff]
    %v2086 = vld [vmem:[#allocation4 + $0x58] sm:$0xff]
    %v2087 = vld [vmem:[#allocation4 + $0x60] sm:$0xff]
    %v2088 = vld [vmem:[#allocation4 + $0x68] sm:$0xff]
    %v2089 = vld [vmem:[#allocation4 + $0x70] sm:$0xff]
    %v2090 = vld [vmem:[#allocation4 + $0x78] sm:$0xff]
    %v2091 = vld [vmem:[#allocation4 + $0x80] sm:$0xff]
    %v2092 = vld [vmem:[#allocation4 + $0x88] sm:$0xff]
    %v2093 = vld [vmem:[#allocation4 + $0x90] sm:$0xff]
    %v2094 = vld [vmem:[#allocation4 + $0x98] sm:$0xff]
    %v2095 = vld [vmem:[#allocation4 + $0xa0] sm:$0xff]
    %v2096 = vld [vmem:[#allocation4 + $0xa8] sm:$0xff]
    %v2097 = vld [vmem:[#allocation4 + $0xb0] sm:$0xff]
    %v2098 = vld [vmem:[#allocation4 + $0xb8] sm:$0xff]
    %v2099 = vld [vmem:[#allocation4 + $0xc0] sm:$0xff]
    %v2100 = vld [vmem:[#allocation4 + $0xc8] sm:$0xff]
    %v2101 = vld [vmem:[#allocation4 + $0xd0] sm:$0xff]
    %v2102 = vld [vmem:[#allocation4 + $0xd8] sm:$0xff]
    %v2103 = vld [vmem:[#allocation4 + $0xe0] sm:$0xff]
    %v2104 = vld [vmem:[#allocation4 + $0xe8] sm:$0xff]
    %v2105 = vld [vmem:[#allocation4 + $0xf0] sm:$0xff]
    %v2106 = vld [vmem:[#allocation4 + $0xf8] sm:$0xff]
    %v2107 = vld [vmem:[#allocation4 + $0x100] sm:$0xff]
    %v2108 = vld [vmem:[#allocation4 + $0x108] sm:$0xff]
    %v2109 = vld [vmem:[#allocation4 + $0x110] sm:$0xff]
    %v2110 = vld [vmem:[#allocation4 + $0x118] sm:$0xff]
    %v2111 = vld [vmem:[#allocation4 + $0x120] sm:$0xff]
    %v2112 = vld [vmem:[#allocation4 + $0x128] sm:$0xff]
    %v2113 = vld [vmem:[#allocation4 + $0x130] sm:$0xff]
    %v2114 = vld [vmem:[#allocation4 + $0x138] sm:$0xff]
    %v2115 = vld [vmem:[#allocation4 + $0x140] sm:$0xff]
    %v2116 = vld [vmem:[#allocation4 + $0x148] sm:$0xff]
    %v2117 = vld [vmem:[#allocation4 + $0x150] sm:$0xff]
    %v2118 = vld [vmem:[#allocation4 + $0x158] sm:$0xff]
    %v2119 = vld [vmem:[#allocation4 + $0x160] sm:$0xff]
    %v2120 = vld [vmem:[#allocation4 + $0x168] sm:$0xff]
    %v2121 = vld [vmem:[#allocation4 + $0x170] sm:$0xff]
    %v2122 = vld [vmem:[#allocation4 + $0x178] sm:$0xff]
    %v2123 = vld [vmem:[#allocation4 + $0x180] sm:$0xff]
    %v2124 = vld [vmem:[#allocation4 + $0x188] sm:$0xff]
    %v2125 = vld [vmem:[#allocation4 + $0x190] sm:$0xff]
    %v2126 = vld [vmem:[#allocation4 + $0x198] sm:$0xff]
    %v2127 = vld [vmem:[#allocation4 + $0x1a0] sm:$0xff]
    %v2128 = vld [vmem:[#allocation4 + $0x1a8] sm:$0xff]
    %v2129 = vld [vmem:[#allocation4 + $0x1b0] sm:$0xff]
    %v2130 = vld [vmem:[#allocation4 + $0x1b8] sm:$0xff]
    %v2131 = vld [vmem:[#allocation4 + $0x1c0] sm:$0xff]
    %v2132 = vld [vmem:[#allocation4 + $0x1c8] sm:$0xff]
    %v2133 = vld [vmem:[#allocation4 + $0x1d0] sm:$0xff]
    %v2134 = vld [vmem:[#allocation4 + $0x1d8] sm:$0xff]
    %v2135 = vld [vmem:[#allocation4 + $0x1e0] sm:$0xff]
    %v2136 = vld [vmem:[#allocation4 + $0x1e8] sm:$0xff]
    %v2137 = vld [vmem:[#allocation4 + $0x1f0] sm:$0xff]
    %v2138 = vld [vmem:[#allocation4 + $0x1f8] sm:$0xff]
    %v2139 = vld [vmem:[%s4] sm:$0x3]
    %v2141 = vperm.slane %v2139, 0
    %v2142 = vperm.slane %v2139, 1
    %v2209 = vunpack.c.l.b16 %v2075
    %v2210 = vunpack.c.h.b16 %v2075
    %v2211 = vunpack.c.l.b16 %v2076
    %v2212 = vunpack.c.h.b16 %v2076
    %v2213 = vunpack.c.l.b16 %v2077
    %v2214 = vunpack.c.h.b16 %v2077
    %v2215 = vunpack.c.l.b16 %v2078
    %v2216 = vunpack.c.h.b16 %v2078
    %v2217 = vunpack.c.l.b16 %v2079
    %v2218 = vunpack.c.h.b16 %v2079
    %v2219 = vunpack.c.l.b16 %v2080
    %v2220 = vunpack.c.h.b16 %v2080
    %v2221 = vunpack.c.l.b16 %v2081
    %v2222 = vunpack.c.h.b16 %v2081
    %v2223 = vunpack.c.l.b16 %v2082
    %v2224 = vunpack.c.h.b16 %v2082
    %v2225 = vunpack.c.l.b16 %v2083
    %v2226 = vunpack.c.h.b16 %v2083
    %v2227 = vunpack.c.l.b16 %v2084
    %v2228 = vunpack.c.h.b16 %v2084
    %v2229 = vunpack.c.l.b16 %v2085
    %v2230 = vunpack.c.h.b16 %v2085
    %v2231 = vunpack.c.l.b16 %v2086
    %v2232 = vunpack.c.h.b16 %v2086
    %v2233 = vunpack.c.l.b16 %v2087
    %v2234 = vunpack.c.h.b16 %v2087
    %v2235 = vunpack.c.l.b16 %v2088
    %v2236 = vunpack.c.h.b16 %v2088
    %v2237 = vunpack.c.l.b16 %v2089
    %v2238 = vunpack.c.h.b16 %v2089
    %v2239 = vunpack.c.l.b16 %v2090
    %v2240 = vunpack.c.h.b16 %v2090
    %v2241 = vunpack.c.l.b16 %v2091
    %v2242 = vunpack.c.h.b16 %v2091
    %v2243 = vunpack.c.l.b16 %v2092
    %v2244 = vunpack.c.h.b16 %v2092
    %v2245 = vunpack.c.l.b16 %v2093
    %v2246 = vunpack.c.h.b16 %v2093
    %v2247 = vunpack.c.l.b16 %v2094
    %v2248 = vunpack.c.h.b16 %v2094
    %v2249 = vunpack.c.l.b16 %v2095
    %v2250 = vunpack.c.h.b16 %v2095
    %v2251 = vunpack.c.l.b16 %v2096
    %v2252 = vunpack.c.h.b16 %v2096
    %v2253 = vunpack.c.l.b16 %v2097
    %v2254 = vunpack.c.h.b16 %v2097
    %v2255 = vunpack.c.l.b16 %v2098
    %v2256 = vunpack.c.h.b16 %v2098
    %v2257 = vunpack.c.l.b16 %v2099
    %v2258 = vunpack.c.h.b16 %v2099
    %v2259 = vunpack.c.l.b16 %v2100
    %v2260 = vunpack.c.h.b16 %v2100
    %v2261 = vunpack.c.l.b16 %v2101
    %v2262 = vunpack.c.h.b16 %v2101
    %v2263 = vunpack.c.l.b16 %v2102
    %v2264 = vunpack.c.h.b16 %v2102
    %v2265 = vunpack.c.l.b16 %v2103
    %v2266 = vunpack.c.h.b16 %v2103
    %v2267 = vunpack.c.l.b16 %v2104
    %v2268 = vunpack.c.h.b16 %v2104
    %v2269 = vunpack.c.l.b16 %v2105
    %v2270 = vunpack.c.h.b16 %v2105
    %v2271 = vunpack.c.l.b16 %v2106
    %v2272 = vunpack.c.h.b16 %v2106
    %v2273 = vunpack.c.l.b16 %v2107
    %v2274 = vunpack.c.h.b16 %v2107
    %v2275 = vunpack.c.l.b16 %v2108
    %v2276 = vunpack.c.h.b16 %v2108
    %v2277 = vunpack.c.l.b16 %v2109
    %v2278 = vunpack.c.h.b16 %v2109
    %v2279 = vunpack.c.l.b16 %v2110
    %v2280 = vunpack.c.h.b16 %v2110
    %v2281 = vunpack.c.l.b16 %v2111
    %v2282 = vunpack.c.h.b16 %v2111
    %v2283 = vunpack.c.l.b16 %v2112
    %v2284 = vunpack.c.h.b16 %v2112
    %v2285 = vunpack.c.l.b16 %v2113
    %v2286 = vunpack.c.h.b16 %v2113
    %v2287 = vunpack.c.l.b16 %v2114
    %v2288 = vunpack.c.h.b16 %v2114
    %v2289 = vunpack.c.l.b16 %v2115
    %v2290 = vunpack.c.h.b16 %v2115
    %v2291 = vunpack.c.l.b16 %v2116
    %v2292 = vunpack.c.h.b16 %v2116
    %v2293 = vunpack.c.l.b16 %v2117
    %v2294 = vunpack.c.h.b16 %v2117
    %v2295 = vunpack.c.l.b16 %v2118
    %v2296 = vunpack.c.h.b16 %v2118
    %v2297 = vunpack.c.l.b16 %v2119
    %v2298 = vunpack.c.h.b16 %v2119
    %v2299 = vunpack.c.l.b16 %v2120
    %v2300 = vunpack.c.h.b16 %v2120
    %v2301 = vunpack.c.l.b16 %v2121
    %v2302 = vunpack.c.h.b16 %v2121
    %v2303 = vunpack.c.l.b16 %v2122
    %v2304 = vunpack.c.h.b16 %v2122
    %v2305 = vunpack.c.l.b16 %v2123
    %v2306 = vunpack.c.h.b16 %v2123
    %v2307 = vunpack.c.l.b16 %v2124
    %v2308 = vunpack.c.h.b16 %v2124
    %v2309 = vunpack.c.l.b16 %v2125
    %v2310 = vunpack.c.h.b16 %v2125
    %v2311 = vunpack.c.l.b16 %v2126
    %v2312 = vunpack.c.h.b16 %v2126
    %v2313 = vunpack.c.l.b16 %v2127
    %v2314 = vunpack.c.h.b16 %v2127
    %v2315 = vunpack.c.l.b16 %v2128
    %v2316 = vunpack.c.h.b16 %v2128
    %v2317 = vunpack.c.l.b16 %v2129
    %v2318 = vunpack.c.h.b16 %v2129
    %v2319 = vunpack.c.l.b16 %v2130
    %v2320 = vunpack.c.h.b16 %v2130
    %v2321 = vunpack.c.l.b16 %v2131
    %v2322 = vunpack.c.h.b16 %v2131
    %v2323 = vunpack.c.l.b16 %v2132
    %v2324 = vunpack.c.h.b16 %v2132
    %v2325 = vunpack.c.l.b16 %v2133
    %v2326 = vunpack.c.h.b16 %v2133
    %v2327 = vunpack.c.l.b16 %v2134
    %v2328 = vunpack.c.h.b16 %v2134
    %v2329 = vunpack.c.l.b16 %v2135
    %v2330 = vunpack.c.h.b16 %v2135
    %v2331 = vunpack.c.l.b16 %v2136
    %v2332 = vunpack.c.h.b16 %v2136
    %v2333 = vunpack.c.l.b16 %v2137
    %v2334 = vunpack.c.h.b16 %v2137
    %v2335 = vunpack.c.l.b16 %v2138
    %v2336 = vunpack.c.h.b16 %v2138
    %v2337 = vpack.c.b16 %v2211, %v2209
    %v2338 = vpack.c.b16 %v2212, %v2210
    %v2339 = vpack.c.b16 %v2215, %v2213
    %v2340 = vpack.c.b16 %v2216, %v2214
    %v2341 = vpack.c.b16 %v2219, %v2217
    %v2342 = vpack.c.b16 %v2220, %v2218
    %v2343 = vpack.c.b16 %v2223, %v2221
    %v2344 = vpack.c.b16 %v2224, %v2222
    %v2345 = vpack.c.b16 %v2227, %v2225
    %v2346 = vpack.c.b16 %v2228, %v2226
    %v2347 = vpack.c.b16 %v2231, %v2229
    %v2348 = vpack.c.b16 %v2232, %v2230
    %v2349 = vpack.c.b16 %v2235, %v2233
    %v2350 = vpack.c.b16 %v2236, %v2234
    %v2351 = vpack.c.b16 %v2239, %v2237
    %v2352 = vpack.c.b16 %v2240, %v2238
    %v2353 = vpack.c.b16 %v2243, %v2241
    %v2354 = vpack.c.b16 %v2244, %v2242
    %v2355 = vpack.c.b16 %v2247, %v2245
    %v2356 = vpack.c.b16 %v2248, %v2246
    %v2357 = vpack.c.b16 %v2251, %v2249
    %v2358 = vpack.c.b16 %v2252, %v2250
    %v2359 = vpack.c.b16 %v2255, %v2253
    %v2360 = vpack.c.b16 %v2256, %v2254
    %v2361 = vpack.c.b16 %v2259, %v2257
    %v2362 = vpack.c.b16 %v2260, %v2258
    %v2363 = vpack.c.b16 %v2263, %v2261
    %v2364 = vpack.c.b16 %v2264, %v2262
    %v2365 = vpack.c.b16 %v2267, %v2265
    %v2366 = vpack.c.b16 %v2268, %v2266
    %v2367 = vpack.c.b16 %v2271, %v2269
    %v2368 = vpack.c.b16 %v2272, %v2270
    %v2369 = vpack.c.b16 %v2275, %v2273
    %v2370 = vpack.c.b16 %v2276, %v2274
    %v2371 = vpack.c.b16 %v2279, %v2277
    %v2372 = vpack.c.b16 %v2280, %v2278
    %v2373 = vpack.c.b16 %v2283, %v2281
    %v2374 = vpack.c.b16 %v2284, %v2282
    %v2375 = vpack.c.b16 %v2287, %v2285
    %v2376 = vpack.c.b16 %v2288, %v2286
    %v2377 = vpack.c.b16 %v2291, %v2289
    %v2378 = vpack.c.b16 %v2292, %v2290
    %v2379 = vpack.c.b16 %v2295, %v2293
    %v2380 = vpack.c.b16 %v2296, %v2294
    %v2381 = vpack.c.b16 %v2299, %v2297
    %v2382 = vpack.c.b16 %v2300, %v2298
    %v2383 = vpack.c.b16 %v2303, %v2301
    %v2384 = vpack.c.b16 %v2304, %v2302
    %v2385 = vpack.c.b16 %v2307, %v2305
    %v2386 = vpack.c.b16 %v2308, %v2306
    %v2387 = vpack.c.b16 %v2311, %v2309
    %v2388 = vpack.c.b16 %v2312, %v2310
    %v2389 = vpack.c.b16 %v2315, %v2313
    %v2390 = vpack.c.b16 %v2316, %v2314
    %v2391 = vpack.c.b16 %v2319, %v2317
    %v2392 = vpack.c.b16 %v2320, %v2318
    %v2393 = vpack.c.b16 %v2323, %v2321
    %v2394 = vpack.c.b16 %v2324, %v2322
    %v2395 = vpack.c.b16 %v2327, %v2325
    %v2396 = vpack.c.b16 %v2328, %v2326
    %v2397 = vpack.c.b16 %v2331, %v2329
    %v2398 = vpack.c.b16 %v2332, %v2330
    %v2399 = vpack.c.b16 %v2335, %v2333
    %v2400 = vpack.c.b16 %v2336, %v2334
    %2465 = vmatpush.bf16.msra.mxu0 %v2351
    %2466 = vmatpush.bf16.msra.mxu0 %v2349
    %2467 = vmatpush.bf16.msra.mxu0 %v2347
    %2468 = vmatpush.bf16.msra.mxu0 %v2345
    %2469 = vmatpush.bf16.msra.mxu0 %v2343
    %2470 = vmatpush.bf16.msra.mxu0 %v2341
    %2471 = vmatpush.bf16.msra.mxu0 %v2339
    %2472 = vmatpush.bf16.msra.mxu0 %v2337
    %2473 = vmatmul.bf16.gmra.mxu0 %v2071
    %v2474 = vpop.f32.mrf.mxu0
    %v2475 = vadd.f32 %v2141, %v2474
    %v2476 = vpop.f32.mrf.mxu0
    %2477 = vdwg.mxu0
    %2478 = vmatpush.bf16.msra.mxu0 %v2367
    %2479 = vmatpush.bf16.msra.mxu0 %v2365
    %2480 = vmatpush.bf16.msra.mxu0 %v2363
    %2481 = vmatpush.bf16.msra.mxu0 %v2361
    %2482 = vmatpush.bf16.msra.mxu0 %v2359
    %2483 = vmatpush.bf16.msra.mxu0 %v2357
    %2484 = vmatpush.bf16.msra.mxu0 %v2355
    %2485 = vmatpush.bf16.msra.mxu0 %v2353
    %2486 = vmatmul.bf16.gmra.mxu0 %v2072
    %v2487 = vpop.f32.mrf.mxu0
    %v2488 = vadd.f32 %v2475, %v2487
    %v2489 = vpop.f32.mrf.mxu0
    %2490 = vdwg.mxu0
    %2491 = vmatpush.bf16.msra.mxu0 %v2383
    %2492 = vmatpush.bf16.msra.mxu0 %v2381
    %2493 = vmatpush.bf16.msra.mxu0 %v2379
    %2494 = vmatpush.bf16.msra.mxu0 %v2377
    %2495 = vmatpush.bf16.msra.mxu0 %v2375
    %2496 = vmatpush.bf16.msra.mxu0 %v2373
    %2497 = vmatpush.bf16.msra.mxu0 %v2371
    %2498 = vmatpush.bf16.msra.mxu0 %v2369
    %2499 = vmatmul.bf16.gmra.mxu0 %v2073
    %v2500 = vpop.f32.mrf.mxu0
    %v2501 = vadd.f32 %v2488, %v2500
    %v2502 = vpop.f32.mrf.mxu0
    %2503 = vdwg.mxu0
    %2504 = vmatpush.bf16.msra.mxu0 %v2399
    %2505 = vmatpush.bf16.msra.mxu0 %v2397
    %2506 = vmatpush.bf16.msra.mxu0 %v2395
    %2507 = vmatpush.bf16.msra.mxu0 %v2393
    %2508 = vmatpush.bf16.msra.mxu0 %v2391
    %2509 = vmatpush.bf16.msra.mxu0 %v2389
    %2510 = vmatpush.bf16.msra.mxu0 %v2387
    %2511 = vmatpush.bf16.msra.mxu0 %v2385
    %2512 = vmatmul.bf16.gmra.mxu0 %v2074
    %v2513 = vpop.f32.mrf.mxu0
    %v2514 = vadd.f32 %v2501, %v2513
    %v2515 = vpop.f32.mrf.mxu0
    %2516 = vdwg.mxu0
    %2517 = vmatpush.bf16.msra.mxu0 %v2352
    %2518 = vmatpush.bf16.msra.mxu0 %v2350
    %2519 = vmatpush.bf16.msra.mxu0 %v2348
    %2520 = vmatpush.bf16.msra.mxu0 %v2346
    %2521 = vmatpush.bf16.msra.mxu0 %v2344
    %2522 = vmatpush.bf16.msra.mxu0 %v2342
    %2523 = vmatpush.bf16.msra.mxu0 %v2340
    %2524 = vmatpush.bf16.msra.mxu0 %v2338
    %2525 = vmatmul.bf16.gmra.mxu0 %v2071
    %v2526 = vpop.f32.mrf.mxu0
    %v2527 = vadd.f32 %v2142, %v2526
    %v2528 = vpop.f32.mrf.mxu0
    %2529 = vdwg.mxu0
    %2530 = vmatpush.bf16.msra.mxu0 %v2368
    %2531 = vmatpush.bf16.msra.mxu0 %v2366
    %2532 = vmatpush.bf16.msra.mxu0 %v2364
    %2533 = vmatpush.bf16.msra.mxu0 %v2362
    %2534 = vmatpush.bf16.msra.mxu0 %v2360
    %2535 = vmatpush.bf16.msra.mxu0 %v2358
    %2536 = vmatpush.bf16.msra.mxu0 %v2356
    %2537 = vmatpush.bf16.msra.mxu0 %v2354
    %2538 = vmatmul.bf16.gmra.mxu0 %v2072
    %v2539 = vpop.f32.mrf.mxu0
    %v2540 = vadd.f32 %v2527, %v2539
    %v2541 = vpop.f32.mrf.mxu0
    %2542 = vdwg.mxu0
    %2543 = vmatpush.bf16.msra.mxu0 %v2384
    %2544 = vmatpush.bf16.msra.mxu0 %v2382
    %2545 = vmatpush.bf16.msra.mxu0 %v2380
    %2546 = vmatpush.bf16.msra.mxu0 %v2378
    %2547 = vmatpush.bf16.msra.mxu0 %v2376
    %2548 = vmatpush.bf16.msra.mxu0 %v2374
    %2549 = vmatpush.bf16.msra.mxu0 %v2372
    %2550 = vmatpush.bf16.msra.mxu0 %v2370
    %2551 = vmatmul.bf16.gmra.mxu0 %v2073
    %v2552 = vpop.f32.mrf.mxu0
    %v2553 = vadd.f32 %v2540, %v2552
    %v2554 = vpop.f32.mrf.mxu0
    %2555 = vdwg.mxu0
    %2556 = vmatpush.bf16.msra.mxu0 %v2400
    %2557 = vmatpush.bf16.msra.mxu0 %v2398
    %2558 = vmatpush.bf16.msra.mxu0 %v2396
    %2559 = vmatpush.bf16.msra.mxu0 %v2394
    %2560 = vmatpush.bf16.msra.mxu0 %v2392
    %2561 = vmatpush.bf16.msra.mxu0 %v2390
    %2562 = vmatpush.bf16.msra.mxu0 %v2388
    %2563 = vmatpush.bf16.msra.mxu0 %v2386
    %2564 = vmatmul.bf16.gmra.mxu0 %v2074
    %v2565 = vpop.f32.mrf.mxu0
    %v2566 = vadd.f32 %v2553, %v2565
    %v2567 = vpop.f32.mrf.mxu0
    %2568 = vdwg.mxu0
    %v2569 = vmax.f32 %v2514, 0.0
    %v2570 = vmax.f32 %v2566, 0.0
    %v2571 = vpack.c.bf16 %v2569, %v2569
    %v2572 = vpack.c.bf16 %v2570, %v2570
    %v2573 = vld [vmem:[#allocation6] sm:$0xf]
    %v2574 = vld [vmem:[#allocation6 + $0x4] sm:$0xf]
    %v2575 = vld [vmem:[#allocation6 + $0x8] sm:$0xf]
    %v2576 = vld [vmem:[#allocation6 + $0xc] sm:$0xf]
    %v2577 = vld [vmem:[#allocation6 + $0x10] sm:$0xf]
    %v2578 = vld [vmem:[#allocation6 + $0x14] sm:$0xf]
    %v2579 = vld [vmem:[#allocation6 + $0x18] sm:$0xf]
    %v2580 = vld [vmem:[#allocation6 + $0x1c] sm:$0xf]
    %v2581 = vld [vmem:[#allocation6 + $0x20] sm:$0xf]
    %v2582 = vld [vmem:[#allocation6 + $0x24] sm:$0xf]
    %v2583 = vld [vmem:[#allocation6 + $0x28] sm:$0xf]
    %v2584 = vld [vmem:[#allocation6 + $0x2c] sm:$0xf]
    %v2585 = vld [vmem:[#allocation6 + $0x30] sm:$0xf]
    %v2586 = vld [vmem:[#allocation6 + $0x34] sm:$0xf]
    %v2587 = vld [vmem:[#allocation6 + $0x38] sm:$0xf]
    %v2588 = vld [vmem:[#allocation6 + $0x3c] sm:$0xf]
    %v2589 = vld [vmem:[#allocation6 + $0x40] sm:$0xf]
    %v2590 = vld [vmem:[#allocation6 + $0x44] sm:$0xf]
    %v2591 = vld [vmem:[#allocation6 + $0x48] sm:$0xf]
    %v2592 = vld [vmem:[#allocation6 + $0x4c] sm:$0xf]
    %v2593 = vld [vmem:[#allocation6 + $0x50] sm:$0xf]
    %v2594 = vld [vmem:[#allocation6 + $0x54] sm:$0xf]
    %v2595 = vld [vmem:[#allocation6 + $0x58] sm:$0xf]
    %v2596 = vld [vmem:[#allocation6 + $0x5c] sm:$0xf]
    %v2597 = vld [vmem:[#allocation6 + $0x60] sm:$0xf]
    %v2598 = vld [vmem:[#allocation6 + $0x64] sm:$0xf]
    %v2599 = vld [vmem:[#allocation6 + $0x68] sm:$0xf]
    %v2600 = vld [vmem:[#allocation6 + $0x6c] sm:$0xf]
    %v2601 = vld [vmem:[#allocation6 + $0x70] sm:$0xf]
    %v2602 = vld [vmem:[#allocation6 + $0x74] sm:$0xf]
    %v2603 = vld [vmem:[#allocation6 + $0x78] sm:$0xf]
    %v2604 = vld [vmem:[#allocation6 + $0x7c] sm:$0xf]
    %v2605 = vld [vmem:[%s6] sm:$0x1]
    %v2607 = vperm.slane %v2605, 0
    %v2641 = vunpack.c.l.b16 %v2573
    %v2642 = vunpack.c.l.b16 %v2574
    %v2643 = vunpack.c.l.b16 %v2575
    %v2644 = vunpack.c.l.b16 %v2576
    %v2645 = vunpack.c.l.b16 %v2577
    %v2646 = vunpack.c.l.b16 %v2578
    %v2647 = vunpack.c.l.b16 %v2579
    %v2648 = vunpack.c.l.b16 %v2580
    %v2649 = vunpack.c.l.b16 %v2581
    %v2650 = vunpack.c.l.b16 %v2582
    %v2651 = vunpack.c.l.b16 %v2583
    %v2652 = vunpack.c.l.b16 %v2584
    %v2653 = vunpack.c.l.b16 %v2585
    %v2654 = vunpack.c.l.b16 %v2586
    %v2655 = vunpack.c.l.b16 %v2587
    %v2656 = vunpack.c.l.b16 %v2588
    %v2657 = vunpack.c.l.b16 %v2589
    %v2658 = vunpack.c.l.b16 %v2590
    %v2659 = vunpack.c.l.b16 %v2591
    %v2660 = vunpack.c.l.b16 %v2592
    %v2661 = vunpack.c.l.b16 %v2593
    %v2662 = vunpack.c.l.b16 %v2594
    %v2663 = vunpack.c.l.b16 %v2595
    %v2664 = vunpack.c.l.b16 %v2596
    %v2665 = vunpack.c.l.b16 %v2597
    %v2666 = vunpack.c.l.b16 %v2598
    %v2667 = vunpack.c.l.b16 %v2599
    %v2668 = vunpack.c.l.b16 %v2600
    %v2669 = vunpack.c.l.b16 %v2601
    %v2670 = vunpack.c.l.b16 %v2602
    %v2671 = vunpack.c.l.b16 %v2603
    %v2672 = vunpack.c.l.b16 %v2604
    %v2673 = vpack.c.b16 %v2642, %v2641
    %v2674 = vpack.c.b16 %v2644, %v2643
    %v2675 = vpack.c.b16 %v2646, %v2645
    %v2676 = vpack.c.b16 %v2648, %v2647
    %v2677 = vpack.c.b16 %v2650, %v2649
    %v2678 = vpack.c.b16 %v2652, %v2651
    %v2679 = vpack.c.b16 %v2654, %v2653
    %v2680 = vpack.c.b16 %v2656, %v2655
    %v2681 = vpack.c.b16 %v2658, %v2657
    %v2682 = vpack.c.b16 %v2660, %v2659
    %v2683 = vpack.c.b16 %v2662, %v2661
    %v2684 = vpack.c.b16 %v2664, %v2663
    %v2685 = vpack.c.b16 %v2666, %v2665
    %v2686 = vpack.c.b16 %v2668, %v2667
    %v2687 = vpack.c.b16 %v2670, %v2669
    %v2688 = vpack.c.b16 %v2672, %v2671
    %2705 = vmatpush.bf16.msra.mxu0 %v2680
    %2706 = vmatpush.bf16.msra.mxu0 %v2679
    %2707 = vmatpush.bf16.msra.mxu0 %v2678
    %2708 = vmatpush.bf16.msra.mxu0 %v2677
    %2709 = vmatpush.bf16.msra.mxu0 %v2676
    %2710 = vmatpush.bf16.msra.mxu0 %v2675
    %2711 = vmatpush.bf16.msra.mxu0 %v2674
    %2712 = vmatpush.bf16.msra.mxu0 %v2673
    %2713 = vmatmul.bf16.gmra.mxu0 %v2571
    %v2714 = vpop.f32.mrf.mxu0
    %v2715 = vadd.f32 %v2607, %v2714
    %v2716 = vpop.f32.mrf.mxu0
    %2717 = vdwg.mxu0
    %2718 = vmatpush.bf16.msra.mxu0 %v2688
    %2719 = vmatpush.bf16.msra.mxu0 %v2687
    %2720 = vmatpush.bf16.msra.mxu0 %v2686
    %2721 = vmatpush.bf16.msra.mxu0 %v2685
    %2722 = vmatpush.bf16.msra.mxu0 %v2684
    %2723 = vmatpush.bf16.msra.mxu0 %v2683
    %2724 = vmatpush.bf16.msra.mxu0 %v2682
    %2725 = vmatpush.bf16.msra.mxu0 %v2681
    %2726 = vmatmul.bf16.gmra.mxu0 %v2572
    %v2727 = vpop.f32.mrf.mxu0
    %v2728 = vadd.f32 %v2715, %v2727
    %v2729 = vpop.f32.mrf.mxu0
    %2730 = vdwg.mxu0
    %2731 = vst [vmem:[%s7] sm:$0xff] %v2728
    // Predicated region
    $region42: #{model_head.1} parent=1 // pred_check
      _
    $region43: #{model_head.1} parent=1 // pred_check_branch
      %2733 = sbr.rel (0) target = $region45
    $region44: #{model_head.1} parent=1 // pred_region
      _
    $region45: #{model_head.1} parent=1 // pred_fallthru
      _
    // Predicated region
    $region46: #{model_head.1} parent=1 // pred_check
      _
    $region47: #{model_head.1} parent=1 // pred_check_branch
      %2735 = sbr.rel (0) target = $region49
    $region48: #{model_head.1} parent=1 // pred_region
      _
    $region49: #{model_head.1} parent=1 // pred_fallthru
      _
    %2736 = vsyncpa [#allocation3], 1
    %2737 = vsyncpa [#allocation5], 1

</llo_original>
